<compile_context>
chip_gen: v5e
topology: v5e:2x2
jax: 0.10.0
libtpu: 0.0.40
codegen_flags: <defaults>
</compile_context>

<pallas_src>
import functools

import numpy as np
import jax
import jax.numpy as jnp
from jax import lax
from jax.experimental import pallas as pl
from jax.experimental.pallas import tpu as pltpu


# ----------------------------------------------------------------------------
# Deterministic parameter setup (matches torch _fspecial_gauss_1d).
# ----------------------------------------------------------------------------
def _fspecial_gauss_1d(size, sigma):
    coords = np.arange(size, dtype=np.float32) - size // 2
    g = np.exp(-(coords ** 2) / (2.0 * sigma ** 2))
    return g / g.sum()  # shape (size,)


def _round_up(a, b):
    return -(-a // b) * b


def _gauss_band_matrices(H, W, win_size, sigma):
    """Band (Toeplitz) matrices realizing the separable valid convolution.

    gw  (W, Wout_p):  (P2d @ gw)[r, v] = sum_k P2d[r, v + k] * g[k]  (v < Wout)
                      columns [Wout, Wout_p) are zero padding so the later
                      sublane-dim collapse is 8-aligned.
    ght (H, Hout):    (Q2d @ ght)[r, i] = sum_k Q2d[r, i + k] * g[k]
    """
    g = _fspecial_gauss_1d(win_size, sigma)
    Wout = W - win_size + 1
    Hout = H - win_size + 1
    Wout_p = _round_up(Wout, 8)
    gw = np.zeros((W, Wout_p), np.float32)
    ght = np.zeros((H, Hout), np.float32)
    for k in range(win_size):
        gw[np.arange(Wout) + k, np.arange(Wout)] = g[k]
        ght[np.arange(Hout) + k, np.arange(Hout)] = g[k]
    return jnp.asarray(gw), jnp.asarray(ght), Wout, Hout, Wout_p


# ----------------------------------------------------------------------------
# Pallas kernel: TN batch items (all C channels) per grid step.
# ----------------------------------------------------------------------------
def _ssim_block_kernel(gw_ref, ght_ref, x_ref, y_ref, ssim_ref, cs_ref, *,
                       C1, C2, nonneg, wout_valid):
    tn, nch, H, W = x_ref.shape
    npl = tn * nch
    nb = 5 * npl

    # Leading-dim collapse (TN, C) -> (TN*C) is layout-free (minor dims kept).
    x = x_ref[...].astype(jnp.float32).reshape(npl, H, W)
    y = y_ref[...].astype(jnp.float32).reshape(npl, H, W)
    gw = gw_ref[...]                         # (W, Wout_p)   f32
    ght = ght_ref[...]                       # (H, Hout)     f32
    wout_p = gw.shape[1]
    hout = ght.shape[1]

    # Five maps stacked along the (untiled) leading axis: no relayout needed.
    planes = jnp.concatenate([x, y, x * x, y * y, x * y], axis=0)  # (nb, H, W)

    # --- width pass: ONE large-M 2-D MXU matmul (no broadcast copy of gw) ---
    t1 = jnp.dot(planes.reshape(nb * H, W), gw,
                 preferred_element_type=jnp.float32)               # (nb*H, Wout_p)
    t1 = t1.reshape(nb, H, wout_p)

    # --- height pass: minor-dim swap (XLU, overlaps the MXU) + ONE matmul ---
    t1s = jnp.swapaxes(t1, 1, 2)                                   # (nb, Wout_p, H)
    blur = jnp.dot(t1s.reshape(nb * wout_p, H), ght,
                   preferred_element_type=jnp.float32)             # (nb*Wout_p, Hout)
    # Orientation-swapped blur maps (w', h'); the SSIM tail and the mean are
    # orientation-agnostic so no fixup transpose is needed.
    blur = blur.reshape(nb, wout_p, hout)

    mu1 = blur[0 * npl:1 * npl]
    mu2 = blur[1 * npl:2 * npl]
    xx_b = blur[2 * npl:3 * npl]
    yy_b = blur[3 * npl:4 * npl]
    xy_b = blur[4 * npl:5 * npl]

    mu1_sq = mu1 * mu1
    mu2_sq = mu2 * mu2
    mu1_mu2 = mu1 * mu2
    sigma1_sq = xx_b - mu1_sq                # compensation = 1.0
    sigma2_sq = yy_b - mu2_sq
    sigma12 = xy_b - mu1_mu2

    cs_num = 2.0 * sigma12 + C2
    cs_den = sigma1_sq + sigma2_sq + C2
    l_num = 2.0 * mu1_mu2 + C1
    l_den = mu1_sq + mu2_sq + C1

    # Single fused reciprocal covering both ratios; relu (if requested) is
    # still applied to cs_map BEFORE the multiply, matching the reference.
    inv = pl.reciprocal(cs_den * l_den, approx=False)
    cs_map = cs_num * l_den * inv                      # == cs_num / cs_den
    if nonneg:
        cs_map = jnp.maximum(cs_map, 0.0)
        ssim_map = (l_num * cs_den * inv) * cs_map     # == (l_num/l_den)*cs_map
    else:
        ssim_map = l_num * cs_num * inv                # == (l_num/l_den)*(cs_num/cs_den)

    # Mask out the zero-padded Wout columns before the mean (exact, static).
    if wout_valid != wout_p:
        mask = (lax.broadcasted_iota(jnp.int32, (wout_p, hout), 0)
                < wout_valid).astype(jnp.float32)
        ssim_map = ssim_map * mask
        cs_map = cs_map * mask

    inv_count = 1.0 / float(wout_valid * hout)
    s_mean = jnp.sum(jnp.sum(ssim_map, axis=-1), axis=-1) * inv_count   # (npl,)
    c_mean = jnp.sum(jnp.sum(cs_map, axis=-1), axis=-1) * inv_count     # (npl,)
    ssim_ref[...] = s_mean.reshape(tn, 1, nch)
    cs_ref[...] = c_mean.reshape(tn, 1, nch)


# ----------------------------------------------------------------------------
# VMEM sizing helpers.
# ----------------------------------------------------------------------------
def _vmem_step_bytes(tn, C, H, W, wout_p, hout, in_itemsize):
    lane = lambda d: _round_up(max(d, 1), 128)
    sub = lambda d: _round_up(max(d, 1), 8)
    f32 = 4
    npl = tn * C
    nb = 5 * npl
    plane = sub(H) * lane(W)
    t1 = sub(H) * lane(wout_p)
    t1s = sub(wout_p) * lane(H)
    blr = sub(wout_p) * lane(hout)
    b = 0
    b += 2 * 2 * npl * plane * in_itemsize                        # X/Y blocks, 2-buffered
    b += 2 * 2 * (sub(W) * lane(wout_p) + sub(H) * lane(hout)) * f32  # band mats, 2-buffered
    b += 2 * npl * plane * f32                                    # x, y upcast to f32
    b += nb * plane * f32                                         # stacked planes
    b += nb * t1 * f32                                            # width-pass result
    b += nb * t1s * f32                                           # swapped copy
    b += nb * blr * f32                                           # blurred maps
    b += 8 * npl * blr * f32                                      # elementwise temporaries
    return b


def _vmem_capacity_bytes():
    try:
        info = pltpu.get_tpu_info()
        cap = int(getattr(info, "vmem_capacity_bytes", 0) or 0)
        if cap > 0:
            return cap
    except Exception:
        pass
    return 64 * 1024 * 1024   # conservative fallback (v7x-sized)


# ----------------------------------------------------------------------------
# Wrapper (pallas_call + tiny amount of JAX glue for the final mean).
# ----------------------------------------------------------------------------
def ssim_pallas(X, Y, *, win_size=11, win_sigma=1.5, data_range=1.0,
                K=(0.01, 0.03), nonnegative_ssim=False, size_average=True):
    if X.ndim != 4 or X.shape != Y.shape:
        raise ValueError("Inputs must be 4-d tensors of identical shape (NCHW).")
    if win_size % 2 != 1:
        raise ValueError("Window size must be odd.")
    N, C, H, W = X.shape
    if H < win_size or W < win_size:
        raise ValueError("Image spatial dims must be >= win_size.")

    gw, ght, Wout, Hout, Wout_p = _gauss_band_matrices(H, W, win_size, win_sigma)
    C1 = float((K[0] * data_range) ** 2)
    C2 = float((K[1] * data_range) ** 2)

    # Pick a batch block TN: amortize per-grid-step overhead for small planes,
    # but keep >= 2 grid steps when N >= 2 so both v7x TensorCores (and the
    # v5e/v6e megacore scheduler) have parallel work.  Never size past the
    # physical VMEM of the chip (128 MiB v5e/v6e, 64 MiB v7x).
    capacity = _vmem_capacity_bytes()
    budget = int(capacity * 0.85)            # leave headroom, never ask for it all
    itemsize = jnp.dtype(X.dtype).itemsize
    tn = 1
    for cand in sorted({d for d in range(1, N + 1) if N % d == 0}, reverse=True):
        if N >= 2 and N // cand < 2:
            continue
        if _vmem_step_bytes(cand, C, H, W, Wout_p, Hout, itemsize) <= budget // 2:
            tn = cand
            break
    # TODO(synk): if even tn=1 overflows the budget (huge H*W), fall back to
    #             halo'd H-strip tiling instead of whole-plane residency.

    step_bytes = _vmem_step_bytes(tn, C, H, W, Wout_p, Hout, itemsize)
    vmem_limit = int(min(max(2 * step_bytes, 32 * 1024 * 1024), budget))

    kern = functools.partial(_ssim_block_kernel, C1=C1, C2=C2,
                             nonneg=nonnegative_ssim, wout_valid=Wout)

    out_shape = (jax.ShapeDtypeStruct((N, 1, C), jnp.float32),
                 jax.ShapeDtypeStruct((N, 1, C), jnp.float32))

    ssim_n1c, cs_n1c = pl.pallas_call(
        kern,
        out_shape=out_shape,
        grid=(N // tn,),
        in_specs=[
            pl.BlockSpec((W, Wout_p), lambda n: (0, 0)),        # Gw (padded)
            pl.BlockSpec((H, Hout), lambda n: (0, 0)),          # Gh^T
            pl.BlockSpec((tn, C, H, W), lambda n: (n, 0, 0, 0)),
            pl.BlockSpec((tn, C, H, W), lambda n: (n, 0, 0, 0)),
        ],
        out_specs=(
            pl.BlockSpec((tn, 1, C), lambda n: (n, 0, 0)),
            pl.BlockSpec((tn, 1, C), lambda n: (n, 0, 0)),
        ),
        compiler_params=pltpu.CompilerParams(
            dimension_semantics=("parallel",),
            vmem_limit_bytes=vmem_limit),
    )(gw, ght, X, Y)   # X/Y kept in native dtype; upcast happens in-kernel.

    # size_average=False inside _ssim -> per-batch means (over C, H', W').
    ssim_per_batch = jnp.mean(ssim_n1c.reshape(N, C), axis=1)
    cs_per_batch = jnp.mean(cs_n1c.reshape(N, C), axis=1)
    if size_average:
        return jnp.mean(ssim_per_batch), jnp.mean(cs_per_batch)
    return ssim_per_batch, cs_per_batch


class SSIM:
    """Mirror of the PyTorch SSIM module (forward returns the ssim scalar)."""

    # TODO(synk): the torch module defaults data_range=None which crashes in
    # _ssim; we expose data_range explicitly and default it to 1.0.
    def __init__(self, win_size=11, win_sigma=1.5, data_range=1.0,
                 size_average=True, channel=3, K=(0.01, 0.03),
                 nonnegative_ssim=False):
        self.win_size = win_size
        self.win_sigma = win_sigma
        self.data_range = data_range
        self.size_average = size_average
        self.channel = channel
        self.K = K
        self.nonnegative_ssim = nonnegative_ssim

    def __call__(self, X, Y):
        ssim_val, _cs = ssim_pallas(
            X, Y, win_size=self.win_size, win_sigma=self.win_sigma,
            data_range=self.data_range, K=self.K,
            nonnegative_ssim=self.nonnegative_ssim,
            size_average=self.size_average)
        return ssim_val


# ----------------------------------------------------------------------------
# Pure-JAX reference (same math, no Pallas) for a correctness check.
# ----------------------------------------------------------------------------
def _ssim_reference(X, Y, win_size=11, win_sigma=1.5, data_range=1.0,
                    K=(0.01, 0.03)):
    g = jnp.asarray(_fspecial_gauss_1d(win_size, win_sigma))
    C1 = (K[0] * data_range) ** 2
    C2 = (K[1] * data_range) ** 2

    def blur(img):  # NCHW, valid separable conv
        Wout = img.shape[-1] - win_size + 1
        acc = sum(img[..., :, k:k + Wout] * g[k] for k in range(win_size))
        Hout = img.shape[-2] - win_size + 1
        return sum(acc[..., k:k + Hout, :] * g[k] for k in range(win_size))

    mu1, mu2 = blur(X), blur(Y)
    s1 = blur(X * X) - mu1 ** 2
    s2 = blur(Y * Y) - mu2 ** 2
    s12 = blur(X * Y) - mu1 * mu2
    cs_map = (2 * s12 + C2) / (s1 + s2 + C2)
    ssim_map = (2 * mu1 * mu2 + C1) / (mu1 ** 2 + mu2 ** 2 + C1) * cs_map
    return jnp.mean(ssim_map)


if __name__ == "__main__":
    key = jax.random.PRNGKey(0)
    kx, ky = jax.random.split(key)
    # N=2, C=3 (module default channel=3), H=W=16 (>= win_size=11)
    X = jax.random.uniform(kx, (2, 3, 16, 16), dtype=jnp.float32)
    Y = jax.random.uniform(ky, (2, 3, 16, 16), dtype=jnp.float32)

    model = SSIM(win_size=11, win_sigma=1.5, data_range=1.0, size_average=True,
                 channel=3)
    ssim_val = model(X, Y)
    ssim_val = jax.block_until_ready(ssim_val)

    ref = _ssim_reference(X, Y, win_size=11, win_sigma=1.5, data_range=1.0)
    assert jnp.allclose(ssim_val, ref, atol=1e-5, rtol=1e-5), (ssim_val, ref)
    print("KERNEL_OK")
</pallas_src>

<mosaic_0001>
module attributes {stable_mosaic.version = 11 : i64} {
  func.func @_ssim_block_kernel(%arg0: i32, %arg1: memref<16x8xf32, #tpu.memory_space<vmem>>, %arg2: memref<16x6xf32, #tpu.memory_space<vmem>>, %arg3: memref<1x3x16x16xf32, #tpu.memory_space<vmem>>, %arg4: memref<1x3x16x16xf32, #tpu.memory_space<vmem>>, %arg5: memref<1x1x3xf32, #tpu.memory_space<vmem>>, %arg6: memref<1x1x3xf32, #tpu.memory_space<vmem>>) attributes {dimension_semantics = [#tpu.dimension_semantics<parallel>], iteration_bounds = array<i64: 2>, scalar_prefetch = 0 : i64, scratch_operands = 0 : i64, tpu.core_type = #tpu.core_type<tc>, window_params = [{pipeline_mode = #tpu.pipeline_mode<synchronous>, transform_indices = @transform_0, window_bounds = array<i64: 16, 8>}, {pipeline_mode = #tpu.pipeline_mode<synchronous>, transform_indices = @transform_1, window_bounds = array<i64: 16, 6>}, {transform_indices = @transform_2, window_bounds = array<i64: 1, 3, 16, 16>}, {transform_indices = @transform_3, window_bounds = array<i64: 1, 3, 16, 16>}, {transform_indices = @transform_4, window_bounds = array<i64: 1, 1, 3>}, {transform_indices = @transform_5, window_bounds = array<i64: 1, 1, 3>}]} {
    %c0 = arith.constant 0 : index
    %c0_0 = arith.constant 0 : index
    %c0_1 = arith.constant 0 : index
    %c0_2 = arith.constant 0 : index
    %0 = vector.load %arg3[%c0, %c0_0, %c0_1, %c0_2] : memref<1x3x16x16xf32, #tpu.memory_space<vmem>>, vector<1x3x16x16xf32>
    %1 = vector.shape_cast %0 : vector<1x3x16x16xf32> to vector<3x16x16xf32>
    %c0_3 = arith.constant 0 : index
    %c0_4 = arith.constant 0 : index
    %c0_5 = arith.constant 0 : index
    %c0_6 = arith.constant 0 : index
    %2 = vector.load %arg4[%c0_3, %c0_4, %c0_5, %c0_6] : memref<1x3x16x16xf32, #tpu.memory_space<vmem>>, vector<1x3x16x16xf32>
    %3 = vector.shape_cast %2 : vector<1x3x16x16xf32> to vector<3x16x16xf32>
    %c0_7 = arith.constant 0 : index
    %c0_8 = arith.constant 0 : index
    %4 = vector.load %arg1[%c0_7, %c0_8] : memref<16x8xf32, #tpu.memory_space<vmem>>, vector<16x8xf32>
    %c0_9 = arith.constant 0 : index
    %c0_10 = arith.constant 0 : index
    %5 = vector.load %arg2[%c0_9, %c0_10] : memref<16x6xf32, #tpu.memory_space<vmem>>, vector<16x6xf32>
    %6 = arith.mulf %1, %1 : vector<3x16x16xf32>
    %7 = arith.mulf %3, %3 : vector<3x16x16xf32>
    %8 = arith.mulf %1, %3 : vector<3x16x16xf32>
    %9 = tpu.concatenate %1, %3, %6, %7, %8 in 0 : vector<3x16x16xf32>, vector<3x16x16xf32>, vector<3x16x16xf32>, vector<3x16x16xf32>, vector<3x16x16xf32> -> vector<15x16x16xf32>
    %10 = vector.shape_cast %9 : vector<15x16x16xf32> to vector<240x16xf32>
    %cst = arith.constant dense<0.000000e+00> : vector<240x8xf32>
    %11 = tpu.matmul %10, %4, %cst {dimension_numbers = #tpu.dot_dimension_numbers<[1], [0], [0], [1], [0, 0, 1, 1], [], []>} : vector<240x16xf32>, vector<16x8xf32>, vector<240x8xf32> -> vector<240x8xf32>
    %12 = vector.shape_cast %11 : vector<240x8xf32> to vector<15x16x8xf32>
    %13 = tpu.transpose %12, [0, 2, 1] : vector<15x16x8xf32> -> vector<15x8x16xf32>
    %14 = vector.shape_cast %13 : vector<15x8x16xf32> to vector<120x16xf32>
    %cst_11 = arith.constant dense<0.000000e+00> : vector<120x6xf32>
    %15 = tpu.matmul %14, %5, %cst_11 {dimension_numbers = #tpu.dot_dimension_numbers<[1], [0], [0], [1], [0, 0, 1, 1], [], []>} : vector<120x16xf32>, vector<16x6xf32>, vector<120x6xf32> -> vector<120x6xf32>
    %16 = vector.shape_cast %15 : vector<120x6xf32> to vector<15x8x6xf32>
    %17 = vector.extract_strided_slice %16 {offsets = [0, 0, 0], sizes = [3, 8, 6], strides = [1, 1, 1]} : vector<15x8x6xf32> to vector<3x8x6xf32>
    %18 = vector.extract_strided_slice %16 {offsets = [3, 0, 0], sizes = [3, 8, 6], strides = [1, 1, 1]} : vector<15x8x6xf32> to vector<3x8x6xf32>
    %19 = vector.extract_strided_slice %16 {offsets = [6, 0, 0], sizes = [3, 8, 6], strides = [1, 1, 1]} : vector<15x8x6xf32> to vector<3x8x6xf32>
    %20 = vector.extract_strided_slice %16 {offsets = [9, 0, 0], sizes = [3, 8, 6], strides = [1, 1, 1]} : vector<15x8x6xf32> to vector<3x8x6xf32>
    %21 = vector.extract_strided_slice %16 {offsets = [12, 0, 0], sizes = [3, 8, 6], strides = [1, 1, 1]} : vector<15x8x6xf32> to vector<3x8x6xf32>
    %22 = arith.mulf %17, %17 : vector<3x8x6xf32>
    %23 = arith.mulf %18, %18 : vector<3x8x6xf32>
    %24 = arith.mulf %17, %18 : vector<3x8x6xf32>
    %25 = arith.subf %19, %22 : vector<3x8x6xf32>
    %26 = arith.subf %20, %23 : vector<3x8x6xf32>
    %27 = arith.subf %21, %24 : vector<3x8x6xf32>
    %cst_12 = arith.constant 2.000000e+00 : f32
    %28 = vector.broadcast %cst_12 : f32 to vector<3x8x6xf32>
    %29 = arith.mulf %28, %27 : vector<3x8x6xf32>
    %cst_13 = arith.constant 8.99999984E-4 : f32
    %30 = vector.broadcast %cst_13 : f32 to vector<3x8x6xf32>
    %31 = arith.addf %29, %30 : vector<3x8x6xf32>
    %32 = arith.addf %25, %26 : vector<3x8x6xf32>
    %cst_14 = arith.constant 8.99999984E-4 : f32
    %33 = vector.broadcast %cst_14 : f32 to vector<3x8x6xf32>
    %34 = arith.addf %32, %33 : vector<3x8x6xf32>
    %cst_15 = arith.constant 2.000000e+00 : f32
    %35 = vector.broadcast %cst_15 : f32 to vector<3x8x6xf32>
    %36 = arith.mulf %35, %24 : vector<3x8x6xf32>
    %cst_16 = arith.constant 9.99999974E-5 : f32
    %37 = vector.broadcast %cst_16 : f32 to vector<3x8x6xf32>
    %38 = arith.addf %36, %37 : vector<3x8x6xf32>
    %39 = arith.addf %22, %23 : vector<3x8x6xf32>
    %cst_17 = arith.constant 9.99999974E-5 : f32
    %40 = vector.broadcast %cst_17 : f32 to vector<3x8x6xf32>
    %41 = arith.addf %39, %40 : vector<3x8x6xf32>
    %42 = arith.mulf %34, %41 : vector<3x8x6xf32>
    %43 = tpu.reciprocal %42 : vector<3x8x6xf32> -> vector<3x8x6xf32>
    %44 = arith.mulf %31, %41 : vector<3x8x6xf32>
    %45 = arith.mulf %44, %43 : vector<3x8x6xf32>
    %46 = arith.mulf %38, %31 : vector<3x8x6xf32>
    %47 = arith.mulf %46, %43 : vector<3x8x6xf32>
    %48 = tpu.iota {dimensions = array<i32: 0>} : vector<8x6xi32>
    %c6_i32 = arith.constant 6 : i32
    %49 = vector.broadcast %c6_i32 : i32 to vector<8x6xi32>
    %50 = arith.cmpi slt, %48, %49 : vector<8x6xi32>
    %51 = arith.extui %50 : vector<8x6xi1> to vector<8x6xi32>
    %52 = arith.sitofp %51 : vector<8x6xi32> to vector<8x6xf32>
    %53 = vector.shape_cast %52 : vector<8x6xf32> to vector<1x8x6xf32>
    %54 = vector.broadcast %53 : vector<1x8x6xf32> to vector<3x8x6xf32>
    %55 = arith.mulf %47, %54 : vector<3x8x6xf32>
    %56 = vector.shape_cast %52 : vector<8x6xf32> to vector<1x8x6xf32>
    %57 = vector.broadcast %56 : vector<1x8x6xf32> to vector<3x8x6xf32>
    %58 = arith.mulf %45, %57 : vector<3x8x6xf32>
    %cst_18 = arith.constant dense<0.000000e+00> : vector<3x8xf32>
    %59 = vector.multi_reduction <add>, %55, %cst_18 [2] : vector<3x8x6xf32> to vector<3x8xf32>
    %cst_19 = arith.constant dense<0.000000e+00> : vector<3xf32>
    %60 = vector.multi_reduction <add>, %59, %cst_19 [1] : vector<3x8xf32> to vector<3xf32>
    %cst_20 = arith.constant 0.027777778 : f32
    %61 = vector.broadcast %cst_20 : f32 to vector<3xf32>
    %62 = arith.mulf %60, %61 : vector<3xf32>
    %cst_21 = arith.constant dense<0.000000e+00> : vector<3x8xf32>
    %63 = vector.multi_reduction <add>, %58, %cst_21 [2] : vector<3x8x6xf32> to vector<3x8xf32>
    %cst_22 = arith.constant dense<0.000000e+00> : vector<3xf32>
    %64 = vector.multi_reduction <add>, %63, %cst_22 [1] : vector<3x8xf32> to vector<3xf32>
    %cst_23 = arith.constant 0.027777778 : f32
    %65 = vector.broadcast %cst_23 : f32 to vector<3xf32>
    %66 = arith.mulf %64, %65 : vector<3xf32>
    %67 = vector.shape_cast %62 : vector<3xf32> to vector<1x1x3xf32>
    %c0_24 = arith.constant 0 : index
    %c0_25 = arith.constant 0 : index
    %c0_26 = arith.constant 0 : index
    %68 = vector.load %arg5[%c0_24, %c0_25, %c0_26] : memref<1x1x3xf32, #tpu.memory_space<vmem>>, vector<1x1x3xf32>
    tpu.vector_store %arg5[%c0_24, %c0_25, %c0_26], %67 {strides = array<i32>} : memref<1x1x3xf32, #tpu.memory_space<vmem>>, vector<1x1x3xf32>,
    %69 = vector.shape_cast %66 : vector<3xf32> to vector<1x1x3xf32>
    %c0_27 = arith.constant 0 : index
    %c0_28 = arith.constant 0 : index
    %c0_29 = arith.constant 0 : index
    %70 = vector.load %arg6[%c0_27, %c0_28, %c0_29] : memref<1x1x3xf32, #tpu.memory_space<vmem>>, vector<1x1x3xf32>
    tpu.vector_store %arg6[%c0_27, %c0_28, %c0_29], %69 {strides = array<i32>} : memref<1x1x3xf32, #tpu.memory_space<vmem>>, vector<1x1x3xf32>,
    return
  }
  func.func @transform_0(%arg0: i32) -> (i32, i32) {
    %c0_i32 = arith.constant 0 : i32
    %c0_i32_0 = arith.constant 0 : i32
    %c0_i32_1 = arith.constant 0 : i32
    return %c0_i32, %c0_i32_0 : i32, i32
  }
  func.func @transform_1(%arg0: i32) -> (i32, i32) {
    %c0_i32 = arith.constant 0 : i32
    %c0_i32_0 = arith.constant 0 : i32
    %c0_i32_1 = arith.constant 0 : i32
    return %c0_i32, %c0_i32_0 : i32, i32
  }
  func.func @transform_2(%arg0: i32) -> (i32, i32, i32, i32) {
    %c0_i32 = arith.constant 0 : i32
    %c0_i32_0 = arith.constant 0 : i32
    %c0_i32_1 = arith.constant 0 : i32
    %c0_i32_2 = arith.constant 0 : i32
    return %arg0, %c0_i32, %c0_i32_0, %c0_i32_1 : i32, i32, i32, i32
  }
  func.func @transform_3(%arg0: i32) -> (i32, i32, i32, i32) {
    %c0_i32 = arith.constant 0 : i32
    %c0_i32_0 = arith.constant 0 : i32
    %c0_i32_1 = arith.constant 0 : i32
    %c0_i32_2 = arith.constant 0 : i32
    return %arg0, %c0_i32, %c0_i32_0, %c0_i32_1 : i32, i32, i32, i32
  }
  func.func @transform_4(%arg0: i32) -> (i32, i32, i32) {
    %c0_i32 = arith.constant 0 : i32
    %c0_i32_0 = arith.constant 0 : i32
    %c0_i32_1 = arith.constant 0 : i32
    return %arg0, %c0_i32, %c0_i32_0 : i32, i32, i32
  }
  func.func @transform_5(%arg0: i32) -> (i32, i32, i32) {
    %c0_i32 = arith.constant 0 : i32
    %c0_i32_0 = arith.constant 0 : i32
    %c0_i32_1 = arith.constant 0 : i32
    return %arg0, %c0_i32, %c0_i32_0 : i32, i32, i32
  }
}

</mosaic_0001>

<llo_original>
// kernel: tpu_custom_call.1
$region0: #{tpu_custom_call.1}
  #allocation0 [shape = 'u32[]', space=smem, size = 0x4, offset = 0x4, fixed_abs, tag = 'smem constant byte address 0x4 - core index']
  #allocation1 [shape = 'u32[72,128]{1,0:T(1,128)}', space=vmem, size = 0x9000, scoped, tag = 'internal scratch']
  %s0 = inlined_call_operand.vmem [shape: f32[16,8], index: 0, kind: input, shape index: {}]
  %s1 = inlined_call_operand.vmem [shape: f32[16,6], index: 1, kind: input, shape index: {}]
  %s2 = inlined_call_operand.hbm [shape: f32[2,3,16,16], index: 2, kind: input, shape index: {}]
  %s3 = inlined_call_operand.hbm [shape: f32[2,3,16,16], index: 3, kind: input, shape index: {}]
  %s4 = inlined_call_operand.hbm [shape: f32[2,1,3], index: 4, kind: output, shape index: {0}]
  %s5 = inlined_call_operand.hbm [shape: f32[2,1,3], index: 5, kind: output, shape index: {1}]
  %6 = xla_tuple %s4, %s5
  %s7 = sld [smem:[#allocation0]]
  $region65: #{tpu_custom_call.1} parent=0
    _
  %s9 = ssub.s32 1, %s7
  %s10 = scalar_select 0, %s9, %s7
  $region1: #{tpu_custom_call.1} parent=0
    #allocation2 [shape = 'u8[49152]{0}', space=vmem, size = 0xc000, scoped, tag = 'input window, operand 2']
    #allocation3 [shape = 's32[2]{0}', space=sflag, size = 0x8, scoped, tag = 'scoped memory for tpu_custom_call.1']
    #allocation4 [shape = 's32[2]{0}', space=sflag, size = 0x8, scoped, tag = 'scoped memory for tpu_custom_call.1']
    #allocation5 [shape = 'u8[49152]{0}', space=vmem, size = 0xc000, scoped, tag = 'input window, operand 3']
    #allocation6 [shape = 's32[2]{0}', space=sflag, size = 0x8, scoped, tag = 'scoped memory for tpu_custom_call.1']
    #allocation7 [shape = 'u8[1024]{0}', space=vmem, size = 0x400, scoped, tag = 'output window, operand 0']
    #allocation8 [shape = 'u8[1024]{0}', space=vmem, size = 0x400, scoped, tag = 'output window, operand 1']
    #allocation9 [shape = 's32[2]{0}', space=sflag, size = 0x8, scoped, tag = 'scoped memory for tpu_custom_call.1']
    %11 = vsyncpa [#allocation3], 0
    %s12 = scalar_lea.sflag [#allocation3], 1
    %13 = vsyncpa %s12, 0
    %14 = vsyncpa [#allocation6], 0
    %s15 = scalar_lea.sflag [#allocation6], 1
    %16 = vsyncpa %s15, 0
    %17 = vsyncpa [#allocation4], 0
    %s18 = scalar_lea.sflag [#allocation4], 1
    %19 = vsyncpa %s18, 0
    %20 = vsyncpa [#allocation9], 0
    %s21 = scalar_lea.sflag [#allocation9], 1
    %22 = vsyncpa %s21, 0
    loop: start=0, step=1, limit=4
    $region2: #{tpu_custom_call.1} parent=1 // loop_pre_header
      _
    $region3: #{tpu_custom_call.1} parent=1 // loop_header
      %s24 = sphi 0, %s28
      %p25 = scmp.ge.s32.totalorder %s24, 4
      %s32 = sphi 0, %s32
      %s34 = sphi 0, %s32
      %s35 = sphi 0, %s34
      %s49 = sphi 0, %s35
      %s53 = sphi 0, %s53
      %s55 = sphi 0, %s53
      %s56 = sphi 0, %s55
      %s70 = sphi 0, %s56
      %s76 = sphi 0, %s78
      %s79 = sphi 0, %s76
      %s80 = sphi 0, %s79
      %s96 = sphi 0, %s80
      %s102 = sphi 0, %s104
      %s105 = sphi 0, %s102
      %s106 = sphi 0, %s105
      %s122 = sphi 0, %s106
      %s128 = sphi 0, %s130
      %s131 = sphi 0, %s128
      %s132 = sphi 0, %s131
      %s148 = sphi 0, %s132
      %s154 = sphi 0, %s156
      %s157 = sphi 0, %s154
      %s158 = sphi 0, %s157
      %s174 = sphi 0, %s158
    $region4: #{tpu_custom_call.1} parent=1 // loop_header_branch
      %27 = sbr.rel (%p25) target = $region8
    $region5: #{tpu_custom_call.1} parent=1 // loop_body
      %s29 = ssub.s32 %s24, 1
      %s30 = ssub.s32 %s24, 2
      %s31 = sadd.s32 %s24, 1
      %s33 = sadd.s32 %s32, 1
      %p36 = scmp.eq.s32.totalorder %s24, 1
      %p37 = scmp.ne.s32.totalorder %s32, %s34
      %p38 = scmp.eq.s32.totalorder %s24, 0
      %p39 = por %p37, %p38
      %p40 = scmp.ne.s32.totalorder %s32, %s34
      %p41 = scmp.eq.s32.totalorder %s29, 1
      %p42 = por %p40, %p41
      %p43 = scmp.ne.s32.totalorder %s34, %s35
      %p44 = scmp.eq.s32.totalorder %s29, 0
      %p45 = por %p43, %p44
      %p46 = scmp.ne.s32.totalorder %s34, %s35
      %p47 = scmp.eq.s32.totalorder %s30, 1
      %p48 = por %p46, %p47
      %p50 = scmp.ne.s32.totalorder %s35, %s49
      %p51 = scmp.eq.s32.totalorder %s30, 0
      %p52 = por %p50, %p51
      %s54 = sadd.s32 %s53, 1
      %p57 = scmp.eq.s32.totalorder %s24, 1
      %p58 = scmp.ne.s32.totalorder %s53, %s55
      %p59 = scmp.eq.s32.totalorder %s24, 0
      %p60 = por %p58, %p59
      %p61 = scmp.ne.s32.totalorder %s53, %s55
      %p62 = scmp.eq.s32.totalorder %s29, 1
      %p63 = por %p61, %p62
      %p64 = scmp.ne.s32.totalorder %s55, %s56
      %p65 = scmp.eq.s32.totalorder %s29, 0
      %p66 = por %p64, %p65
      %p67 = scmp.ne.s32.totalorder %s55, %s56
      %p68 = scmp.eq.s32.totalorder %s30, 1
      %p69 = por %p67, %p68
      %p71 = scmp.ne.s32.totalorder %s56, %s70
      %p72 = scmp.eq.s32.totalorder %s30, 0
      %p73 = por %p71, %p72
      %s74 = ssub.s32 %s24, %s31
      %p75 = scmp.eq.s32.totalorder %s74, 0
      %s77 = sadd.s32 %s76, 1
      %s78 = scalar_select %p75, %s76, %s77
      %p81 = pneg %p75
      %p82 = scmp.eq.s32.totalorder %s24, 1
      %p83 = por %p81, %p82
      %p84 = scmp.ne.s32.totalorder %s76, %s79
      %p85 = scmp.eq.s32.totalorder %s24, 0
      %p86 = por %p84, %p85
      %p87 = scmp.ne.s32.totalorder %s76, %s79
      %p88 = scmp.eq.s32.totalorder %s29, 1
      %p89 = por %p87, %p88
      %p90 = scmp.ne.s32.totalorder %s79, %s80
      %p91 = scmp.eq.s32.totalorder %s29, 0
      %p92 = por %p90, %p91
      %p93 = scmp.ne.s32.totalorder %s79, %s80
      %p94 = scmp.eq.s32.totalorder %s30, 1
      %p95 = por %p93, %p94
      %p97 = scmp.ne.s32.totalorder %s80, %s96
      %p98 = scmp.eq.s32.totalorder %s30, 0
      %p99 = por %p97, %p98
      %s100 = ssub.s32 %s24, %s31
      %p101 = scmp.eq.s32.totalorder %s100, 0
      %s103 = sadd.s32 %s102, 1
      %s104 = scalar_select %p101, %s102, %s103
      %p107 = pneg %p101
      %p108 = scmp.eq.s32.totalorder %s24, 1
      %p109 = por %p107, %p108
      %p110 = scmp.ne.s32.totalorder %s102, %s105
      %p111 = scmp.eq.s32.totalorder %s24, 0
      %p112 = por %p110, %p111
      %p113 = scmp.ne.s32.totalorder %s102, %s105
      %p114 = scmp.eq.s32.totalorder %s29, 1
      %p115 = por %p113, %p114
      %p116 = scmp.ne.s32.totalorder %s105, %s106
      %p117 = scmp.eq.s32.totalorder %s29, 0
      %p118 = por %p116, %p117
      %p119 = scmp.ne.s32.totalorder %s105, %s106
      %p120 = scmp.eq.s32.totalorder %s30, 1
      %p121 = por %p119, %p120
      %p123 = scmp.ne.s32.totalorder %s106, %s122
      %p124 = scmp.eq.s32.totalorder %s30, 0
      %p125 = por %p123, %p124
      %s126 = ssub.s32 %s24, %s31
      %p127 = scmp.eq.s32.totalorder %s126, 0
      %s129 = sadd.s32 %s128, 1
      %s130 = scalar_select %p127, %s128, %s129
      %p133 = pneg %p127
      %p134 = scmp.eq.s32.totalorder %s24, 1
      %p135 = por %p133, %p134
      %p136 = scmp.ne.s32.totalorder %s128, %s131
      %p137 = scmp.eq.s32.totalorder %s24, 0
      %p138 = por %p136, %p137
      %p139 = scmp.ne.s32.totalorder %s128, %s131
      %p140 = scmp.eq.s32.totalorder %s29, 1
      %p141 = por %p139, %p140
      %p142 = scmp.ne.s32.totalorder %s131, %s132
      %p143 = scmp.eq.s32.totalorder %s29, 0
      %p144 = por %p142, %p143
      %p145 = scmp.ne.s32.totalorder %s131, %s132
      %p146 = scmp.eq.s32.totalorder %s30, 1
      %p147 = por %p145, %p146
      %p149 = scmp.ne.s32.totalorder %s132, %s148
      %p150 = scmp.eq.s32.totalorder %s30, 0
      %p151 = por %p149, %p150
      %s152 = ssub.s32 %s24, %s31
      %p153 = scmp.eq.s32.totalorder %s152, 0
      %s155 = sadd.s32 %s154, 1
      %s156 = scalar_select %p153, %s154, %s155
      %p159 = pneg %p153
      %p160 = scmp.eq.s32.totalorder %s24, 1
      %p161 = por %p159, %p160
      %p162 = scmp.ne.s32.totalorder %s154, %s157
      %p163 = scmp.eq.s32.totalorder %s24, 0
      %p164 = por %p162, %p163
      %p165 = scmp.ne.s32.totalorder %s154, %s157
      %p166 = scmp.eq.s32.totalorder %s29, 1
      %p167 = por %p165, %p166
      %p168 = scmp.ne.s32.totalorder %s157, %s158
      %p169 = scmp.eq.s32.totalorder %s29, 0
      %p170 = por %p168, %p169
      %p171 = scmp.ne.s32.totalorder %s157, %s158
      %p172 = scmp.eq.s32.totalorder %s30, 1
      %p173 = por %p171, %p172
      %p175 = scmp.ne.s32.totalorder %s158, %s174
      %p176 = scmp.eq.s32.totalorder %s30, 0
      %p177 = por %p175, %p176
      %p178 = scmp.le.s32.totalorder 1, %s24
      %p179 = scmp.lt.s32.totalorder %s24, 3
      %p180 = pnand %p178, %p179
      %p181 = pneg %p180
      // Predicated region
      $region9: #{tpu_custom_call.1} parent=5 // pred_check
        _
      $region10: #{tpu_custom_call.1} parent=5 // pred_check_branch
        %183 = sbr.rel (%p180) target = $region12
      $region11: #{tpu_custom_call.1} parent=5 // pred_region
        %s184 = ssub.s32 %s24, 1
        // Predicated region
        $region13: #{tpu_custom_call.1} parent=11 // pred_check
          %p185 = pneg %p45
        $region14: #{tpu_custom_call.1} parent=11 // pred_check_branch
          %187 = sbr.rel (%p185) target = $region16
        $region15: #{tpu_custom_call.1} parent=11 // pred_region
          _
        $region16: #{tpu_custom_call.1} parent=11 // pred_fallthru
          _
        // Predicated region
        $region17: #{tpu_custom_call.1} parent=11 // pred_check
          %p188 = pneg %p66
        $region18: #{tpu_custom_call.1} parent=11 // pred_check_branch
          %190 = sbr.rel (%p188) target = $region20
        $region19: #{tpu_custom_call.1} parent=11 // pred_region
          _
        $region20: #{tpu_custom_call.1} parent=11 // pred_fallthru
          _
      $region12: #{tpu_custom_call.1} parent=5 // pred_fallthru
        _
      %p191 = scmp.lt.s32.totalorder %s24, 2
      // Predicated region
      $region21: #{tpu_custom_call.1} parent=5 // pred_check
        %p192 = pneg %p191
      $region22: #{tpu_custom_call.1} parent=5 // pred_check_branch
        %194 = sbr.rel (%p192) target = $region24
      $region23: #{tpu_custom_call.1} parent=5 // pred_region
        // Predicated region
        $region25: #{tpu_custom_call.1} parent=23 // pred_check
          %p195 = pneg %p86
        $region26: #{tpu_custom_call.1} parent=23 // pred_check_branch
          %197 = sbr.rel (%p195) target = $region28
        $region27: #{tpu_custom_call.1} parent=23 // pred_region
          %s198 = sand.u32 %s76, 1
          %s199 = scalar_lea.sflag [#allocation3], %s198
          %s200 = sand.u32 %s76, 1
          %s201 = smul.addr %s200, 48
          %s202 = scalar_lea.vmem [#allocation2], %s201
          %204 = vsyncadd %s199, 0
          %s205 = smul.addr %s24, 6
          %s206 = smul.addr %s205, 8
          %s207 = scalar_lea.hbm %s2, %s206
          %s208 = sshll.u32 %s207, 4
          %s209 = int_to_ptr.hbm [resolvable:$true] %s208
          %s210 = sshll.u32 %s202, 4
          %s211 = int_to_ptr.vmem [resolvable:$true] %s210
          %216 = dma.hbm_to_vmem [thread:$0]  %s209, 768, %s211, %s199, 128, 128, 8
        $region28: #{tpu_custom_call.1} parent=23 // pred_fallthru
          _
        // Predicated region
        $region29: #{tpu_custom_call.1} parent=23 // pred_check
          %p217 = pneg %p112
        $region30: #{tpu_custom_call.1} parent=23 // pred_check_branch
          %219 = sbr.rel (%p217) target = $region32
        $region31: #{tpu_custom_call.1} parent=23 // pred_region
          %s220 = sand.u32 %s102, 1
          %s221 = scalar_lea.sflag [#allocation6], %s220
          %s222 = sand.u32 %s102, 1
          %s223 = smul.addr %s222, 48
          %s224 = scalar_lea.vmem [#allocation5], %s223
          %226 = vsyncadd %s221, 0
          %s227 = smul.addr %s24, 6
          %s228 = smul.addr %s227, 8
          %s229 = scalar_lea.hbm %s3, %s228
          %s230 = sshll.u32 %s229, 4
          %s231 = int_to_ptr.hbm [resolvable:$true] %s230
          %s232 = sshll.u32 %s224, 4
          %s233 = int_to_ptr.vmem [resolvable:$true] %s232
          %238 = dma.hbm_to_vmem [thread:$0]  %s231, 768, %s233, %s221, 128, 128, 8
        $region32: #{tpu_custom_call.1} parent=23 // pred_fallthru
          _
      $region24: #{tpu_custom_call.1} parent=5 // pred_fallthru
        _
      %p239 = scmp.le.s32.totalorder 1, %s24
      %p240 = scmp.lt.s32.totalorder %s24, 3
      %p241 = pnand %p239, %p240
      %p242 = pneg %p241
      // Predicated region
      $region33: #{tpu_custom_call.1} parent=5 // pred_check
        _
      $region34: #{tpu_custom_call.1} parent=5 // pred_check_branch
        %244 = sbr.rel (%p241) target = $region36
      $region35: #{tpu_custom_call.1} parent=5 // pred_region
        %s245 = ssub.s32 %s24, 1
        %s246 = sand.u32 %s79, 1
        %s247 = scalar_lea.sflag [#allocation3], %s246
        %s248 = sand.u32 %s79, 1
        %s249 = smul.addr %s248, 48
        %s250 = scalar_lea.vmem [#allocation2], %s249
        // Predicated region
        $region37: #{tpu_custom_call.1} parent=35 // pred_check
          %p251 = pneg %p92
        $region38: #{tpu_custom_call.1} parent=35 // pred_check_branch
          %253 = sbr.rel (%p251) target = $region40
        $region39: #{tpu_custom_call.1} parent=35 // pred_region
          %255 = dma.done %s247, 768
        $region40: #{tpu_custom_call.1} parent=35 // pred_fallthru
          _
        %s256 = sand.u32 %s105, 1
        %s257 = scalar_lea.sflag [#allocation6], %s256
        %s258 = sand.u32 %s105, 1
        %s259 = smul.addr %s258, 48
        %s260 = scalar_lea.vmem [#allocation5], %s259
        // Predicated region
        $region41: #{tpu_custom_call.1} parent=35 // pred_check
          %p261 = pneg %p118
        $region42: #{tpu_custom_call.1} parent=35 // pred_check_branch
          %263 = sbr.rel (%p261) target = $region44
        $region43: #{tpu_custom_call.1} parent=35 // pred_region
          %265 = dma.done %s257, 768
        $region44: #{tpu_custom_call.1} parent=35 // pred_fallthru
          _
        %p266 = pneg %p45
        %p267 = pneg %p42
        %p268 = pneg %p66
        %p269 = pneg %p63
        %s270 = sand.u32 %s79, 1
        %s271 = scalar_lea.sflag [#allocation3], %s270
        %s272 = sand.u32 %s79, 1
        %s273 = smul.addr %s272, 48
        %s274 = scalar_lea.vmem [#allocation2], %s273
        %p275 = pneg %p92
        %p276 = pneg %p89
        %s277 = sand.u32 %s105, 1
        %s278 = scalar_lea.sflag [#allocation6], %s277
        %s279 = sand.u32 %s105, 1
        %s280 = smul.addr %s279, 48
        %s281 = scalar_lea.vmem [#allocation5], %s280
        %p282 = pneg %p118
        %p283 = pneg %p115
        %p284 = pneg %p144
        %p285 = pneg %p141
        %s286 = sand.u32 %s131, 1
        %s287 = scalar_lea.sflag [#allocation4], %s286
        %s288 = sand.u32 %s131, 1
        %s289 = scalar_lea.vmem [#allocation7], %s288
        %p290 = pneg %p170
        %p291 = pneg %p167
        %s292 = sand.u32 %s157, 1
        %s293 = scalar_lea.sflag [#allocation9], %s292
        %s294 = sand.u32 %s157, 1
        %s295 = scalar_lea.vmem [#allocation8], %s294
        %v296 = vld [vmem:[%s250] sm:$0xff]
        %v297 = vld [vmem:[%s250 + $0x8] sm:$0xff]
        %v298 = vld [vmem:[%s250 + $0x10] sm:$0xff]
        %v299 = vld [vmem:[%s250 + $0x18] sm:$0xff]
        %v300 = vld [vmem:[%s250 + $0x20] sm:$0xff]
        %v301 = vld [vmem:[%s250 + $0x28] sm:$0xff]
        %v302 = vld [vmem:[%s260] sm:$0xff]
        %v303 = vld [vmem:[%s260 + $0x8] sm:$0xff]
        %v304 = vld [vmem:[%s260 + $0x10] sm:$0xff]
        %v305 = vld [vmem:[%s260 + $0x18] sm:$0xff]
        %v306 = vld [vmem:[%s260 + $0x20] sm:$0xff]
        %v307 = vld [vmem:[%s260 + $0x28] sm:$0xff]
        %v308 = vld [vmem:[%s0] sm:$0xff]
        %v309 = vld [vmem:[%s0 + $0x8] sm:$0xff]
        %v310 = vld [vmem:[%s1] sm:$0xff]
        %v311 = vld [vmem:[%s1 + $0x8] sm:$0xff]
        %v312 = vmul.f32 %v296, %v296
        %v313 = vmul.f32 %v297, %v297
        %v314 = vmul.f32 %v298, %v298
        %v315 = vmul.f32 %v299, %v299
        %v316 = vmul.f32 %v300, %v300
        %v317 = vmul.f32 %v301, %v301
        %v318 = vmul.f32 %v302, %v302
        %v319 = vmul.f32 %v303, %v303
        %v320 = vmul.f32 %v304, %v304
        %v321 = vmul.f32 %v305, %v305
        %v322 = vmul.f32 %v306, %v306
        %v323 = vmul.f32 %v307, %v307
        %v324 = vmul.f32 %v296, %v302
        %v325 = vmul.f32 %v297, %v303
        %v326 = vmul.f32 %v298, %v304
        %v327 = vmul.f32 %v299, %v305
        %v328 = vmul.f32 %v300, %v306
        %v329 = vmul.f32 %v301, %v307
        %vm330 = vcmask 130048
        %v332 = vsel %vm330, %v296, 0
        %v335 = vsel %vm330, %v297, 0
        %v338 = vsel %vm330, %v298, 0
        %v341 = vsel %vm330, %v299, 0
        %v344 = vsel %vm330, %v300, 0
        %v347 = vsel %vm330, %v301, 0
        %v350 = vsel %vm330, %v302, 0
        %v353 = vsel %vm330, %v303, 0
        %v356 = vsel %vm330, %v304, 0
        %v359 = vsel %vm330, %v305, 0
        %v362 = vsel %vm330, %v306, 0
        %v365 = vsel %vm330, %v307, 0
        %v368 = vsel %vm330, %v312, 0
        %v371 = vsel %vm330, %v313, 0
        %v374 = vsel %vm330, %v314, 0
        %v377 = vsel %vm330, %v315, 0
        %v380 = vsel %vm330, %v316, 0
        %v383 = vsel %vm330, %v317, 0
        %v386 = vsel %vm330, %v318, 0
        %v389 = vsel %vm330, %v319, 0
        %v392 = vsel %vm330, %v320, 0
        %v395 = vsel %vm330, %v321, 0
        %v398 = vsel %vm330, %v322, 0
        %v401 = vsel %vm330, %v323, 0
        %v404 = vsel %vm330, %v324, 0
        %v407 = vsel %vm330, %v325, 0
        %v410 = vsel %vm330, %v326, 0
        %v413 = vsel %vm330, %v327, 0
        %v416 = vsel %vm330, %v328, 0
        %v419 = vsel %vm330, %v329, 0
        %421 = vmatpush.msra.mxu0 0.0
        %422 = vmatpush.msra.mxu0 0.0
        %423 = vmatpush.msra.mxu0 0.0
        %424 = vmatpush.msra.mxu0 0.0
        %425 = vmatpush.msra.mxu0 0.0
        %426 = vmatpush.msra.mxu0 0.0
        %427 = vmatpush.msra.mxu0 0.0
        %428 = vmatpush.msra.mxu0 0.0
        %429 = vmatpush.msra.mxu0 0.0
        %430 = vmatpush.msra.mxu0 0.0
        %431 = vmatpush.msra.mxu0 0.0
        %432 = vmatpush.msra.mxu0 0.0
        %433 = vmatpush.msra.mxu0 0.0
        %434 = vmatpush.msra.mxu0 0.0
        %435 = vmatpush.msra.mxu0 %v309
        %436 = vmatpush.msra.mxu0 %v308
        %437 = vmatmul.f32.gmra.mxu0 %v332
        %v438 = vpop.f32.mrf.mxu0
        %v439 = vadd.f32 0.0, %v438
        %440 = vmatmul.f32.gmra.mxu0 %v335
        %v441 = vpop.f32.mrf.mxu0
        %v442 = vadd.f32 0.0, %v441
        %443 = vmatmul.f32.gmra.mxu0 %v338
        %v444 = vpop.f32.mrf.mxu0
        %v445 = vadd.f32 0.0, %v444
        %446 = vmatmul.f32.gmra.mxu0 %v341
        %v447 = vpop.f32.mrf.mxu0
        %v448 = vadd.f32 0.0, %v447
        %449 = vmatmul.f32.gmra.mxu0 %v344
        %v450 = vpop.f32.mrf.mxu0
        %v451 = vadd.f32 0.0, %v450
        %452 = vmatmul.f32.gmra.mxu0 %v347
        %v453 = vpop.f32.mrf.mxu0
        %v454 = vadd.f32 0.0, %v453
        %455 = vmatmul.f32.gmra.mxu0 %v350
        %v456 = vpop.f32.mrf.mxu0
        %v457 = vadd.f32 0.0, %v456
        %458 = vmatmul.f32.gmra.mxu0 %v353
        %v459 = vpop.f32.mrf.mxu0
        %v460 = vadd.f32 0.0, %v459
        %461 = vmatmul.f32.gmra.mxu0 %v356
        %v462 = vpop.f32.mrf.mxu0
        %v463 = vadd.f32 0.0, %v462
        %464 = vmatmul.f32.gmra.mxu0 %v359
        %v465 = vpop.f32.mrf.mxu0
        %v466 = vadd.f32 0.0, %v465
        %467 = vmatmul.f32.gmra.mxu0 %v362
        %v468 = vpop.f32.mrf.mxu0
        %v469 = vadd.f32 0.0, %v468
        %470 = vmatmul.f32.gmra.mxu0 %v365
        %v471 = vpop.f32.mrf.mxu0
        %v472 = vadd.f32 0.0, %v471
        %473 = vmatmul.f32.gmra.mxu0 %v368
        %v474 = vpop.f32.mrf.mxu0
        %v475 = vadd.f32 0.0, %v474
        %476 = vmatmul.f32.gmra.mxu0 %v371
        %v477 = vpop.f32.mrf.mxu0
        %v478 = vadd.f32 0.0, %v477
        %479 = vmatmul.f32.gmra.mxu0 %v374
        %v480 = vpop.f32.mrf.mxu0
        %v481 = vadd.f32 0.0, %v480
        %482 = vmatmul.f32.gmra.mxu0 %v377
        %v483 = vpop.f32.mrf.mxu0
        %v484 = vadd.f32 0.0, %v483
        %485 = vmatmul.f32.gmra.mxu0 %v380
        %v486 = vpop.f32.mrf.mxu0
        %v487 = vadd.f32 0.0, %v486
        %488 = vmatmul.f32.gmra.mxu0 %v383
        %v489 = vpop.f32.mrf.mxu0
        %v490 = vadd.f32 0.0, %v489
        %491 = vmatmul.f32.gmra.mxu0 %v386
        %v492 = vpop.f32.mrf.mxu0
        %v493 = vadd.f32 0.0, %v492
        %494 = vmatmul.f32.gmra.mxu0 %v389
        %v495 = vpop.f32.mrf.mxu0
        %v496 = vadd.f32 0.0, %v495
        %497 = vmatmul.f32.gmra.mxu0 %v392
        %v498 = vpop.f32.mrf.mxu0
        %v499 = vadd.f32 0.0, %v498
        %500 = vmatmul.f32.gmra.mxu0 %v395
        %v501 = vpop.f32.mrf.mxu0
        %v502 = vadd.f32 0.0, %v501
        %503 = vmatmul.f32.gmra.mxu0 %v398
        %v504 = vpop.f32.mrf.mxu0
        %v505 = vadd.f32 0.0, %v504
        %506 = vmatmul.f32.gmra.mxu0 %v401
        %v507 = vpop.f32.mrf.mxu0
        %v508 = vadd.f32 0.0, %v507
        %509 = vmatmul.f32.gmra.mxu0 %v404
        %v510 = vpop.f32.mrf.mxu0
        %v511 = vadd.f32 0.0, %v510
        %512 = vmatmul.f32.gmra.mxu0 %v407
        %v513 = vpop.f32.mrf.mxu0
        %v514 = vadd.f32 0.0, %v513
        %515 = vmatmul.f32.gmra.mxu0 %v410
        %v516 = vpop.f32.mrf.mxu0
        %v517 = vadd.f32 0.0, %v516
        %518 = vmatmul.f32.gmra.mxu0 %v413
        %v519 = vpop.f32.mrf.mxu0
        %v520 = vadd.f32 0.0, %v519
        %521 = vmatmul.f32.gmra.mxu0 %v416
        %v522 = vpop.f32.mrf.mxu0
        %v523 = vadd.f32 0.0, %v522
        %524 = vmatmul.f32.gmra.mxu0 %v419
        %v525 = vpop.f32.mrf.mxu0
        %v526 = vadd.f32 0.0, %v525
        %527 = vdwg.mxu0
        %528 = vxpose.xlu0.b32.start [1/16] %v439, 128
        %529 = vxpose.xlu0.b32.cont [2/16] %v442, 128
        %530 = vxpose.xlu0.b32.cont [3/16] 0.0, 128
        %531 = vxpose.xlu0.b32.cont [4/16] 0.0, 128
        %532 = vxpose.xlu0.b32.cont [5/16] 0.0, 128
        %533 = vxpose.xlu0.b32.cont [6/16] 0.0, 128
        %534 = vxpose.xlu0.b32.cont [7/16] 0.0, 128
        %535 = vxpose.xlu0.b32.cont [8/16] 0.0, 128
        %536 = vxpose.xlu0.b32.cont [9/16] 0.0, 128
        %537 = vxpose.xlu0.b32.cont [10/16] 0.0, 128
        %538 = vxpose.xlu0.b32.cont [11/16] 0.0, 128
        %539 = vxpose.xlu0.b32.cont [12/16] 0.0, 128
        %540 = vxpose.xlu0.b32.cont [13/16] 0.0, 128
        %541 = vxpose.xlu0.b32.cont [14/16] 0.0, 128
        %542 = vxpose.xlu0.b32.cont [15/16] 0.0, 128
        %543 = vxpose.xlu0.b32.end [16/16] 0.0, 128
        %v544 = vpop.trf.xlu0
        %v545 = vpop.trf.xlu0
        %v546 = vpop.trf.xlu0
        %v547 = vpop.trf.xlu0
        %v548 = vpop.trf.xlu0
        %v549 = vpop.trf.xlu0
        %v550 = vpop.trf.xlu0
        %v551 = vpop.trf.xlu0
        %v552 = vpop.trf.xlu0
        %v553 = vpop.trf.xlu0
        %v554 = vpop.trf.xlu0
        %v555 = vpop.trf.xlu0
        %v556 = vpop.trf.xlu0
        %v557 = vpop.trf.xlu0
        %v558 = vpop.trf.xlu0
        %v559 = vpop.trf.xlu0
        %560 = vxpose.xlu0.b32.start [1/16] %v445, 128
        %561 = vxpose.xlu0.b32.cont [2/16] %v448, 128
        %562 = vxpose.xlu0.b32.cont [3/16] 0.0, 128
        %563 = vxpose.xlu0.b32.cont [4/16] 0.0, 128
        %564 = vxpose.xlu0.b32.cont [5/16] 0.0, 128
        %565 = vxpose.xlu0.b32.cont [6/16] 0.0, 128
        %566 = vxpose.xlu0.b32.cont [7/16] 0.0, 128
        %567 = vxpose.xlu0.b32.cont [8/16] 0.0, 128
        %568 = vxpose.xlu0.b32.cont [9/16] 0.0, 128
        %569 = vxpose.xlu0.b32.cont [10/16] 0.0, 128
        %570 = vxpose.xlu0.b32.cont [11/16] 0.0, 128
        %571 = vxpose.xlu0.b32.cont [12/16] 0.0, 128
        %572 = vxpose.xlu0.b32.cont [13/16] 0.0, 128
        %573 = vxpose.xlu0.b32.cont [14/16] 0.0, 128
        %574 = vxpose.xlu0.b32.cont [15/16] 0.0, 128
        %575 = vxpose.xlu0.b32.end [16/16] 0.0, 128
        %v576 = vpop.trf.xlu0
        %v577 = vpop.trf.xlu0
        %v578 = vpop.trf.xlu0
        %v579 = vpop.trf.xlu0
        %v580 = vpop.trf.xlu0
        %v581 = vpop.trf.xlu0
        %v582 = vpop.trf.xlu0
        %v583 = vpop.trf.xlu0
        %v584 = vpop.trf.xlu0
        %v585 = vpop.trf.xlu0
        %v586 = vpop.trf.xlu0
        %v587 = vpop.trf.xlu0
        %v588 = vpop.trf.xlu0
        %v589 = vpop.trf.xlu0
        %v590 = vpop.trf.xlu0
        %v591 = vpop.trf.xlu0
        %592 = vxpose.xlu0.b32.start [1/16] %v451, 128
        %593 = vxpose.xlu0.b32.cont [2/16] %v454, 128
        %594 = vxpose.xlu0.b32.cont [3/16] 0.0, 128
        %595 = vxpose.xlu0.b32.cont [4/16] 0.0, 128
        %596 = vxpose.xlu0.b32.cont [5/16] 0.0, 128
        %597 = vxpose.xlu0.b32.cont [6/16] 0.0, 128
        %598 = vxpose.xlu0.b32.cont [7/16] 0.0, 128
        %599 = vxpose.xlu0.b32.cont [8/16] 0.0, 128
        %600 = vxpose.xlu0.b32.cont [9/16] 0.0, 128
        %601 = vxpose.xlu0.b32.cont [10/16] 0.0, 128
        %602 = vxpose.xlu0.b32.cont [11/16] 0.0, 128
        %603 = vxpose.xlu0.b32.cont [12/16] 0.0, 128
        %604 = vxpose.xlu0.b32.cont [13/16] 0.0, 128
        %605 = vxpose.xlu0.b32.cont [14/16] 0.0, 128
        %606 = vxpose.xlu0.b32.cont [15/16] 0.0, 128
        %607 = vxpose.xlu0.b32.end [16/16] 0.0, 128
        %v608 = vpop.trf.xlu0
        %v609 = vpop.trf.xlu0
        %v610 = vpop.trf.xlu0
        %v611 = vpop.trf.xlu0
        %v612 = vpop.trf.xlu0
        %v613 = vpop.trf.xlu0
        %v614 = vpop.trf.xlu0
        %v615 = vpop.trf.xlu0
        %v616 = vpop.trf.xlu0
        %v617 = vpop.trf.xlu0
        %v618 = vpop.trf.xlu0
        %v619 = vpop.trf.xlu0
        %v620 = vpop.trf.xlu0
        %v621 = vpop.trf.xlu0
        %v622 = vpop.trf.xlu0
        %v623 = vpop.trf.xlu0
        %624 = vxpose.xlu0.b32.start [1/16] %v457, 128
        %625 = vxpose.xlu0.b32.cont [2/16] %v460, 128
        %626 = vxpose.xlu0.b32.cont [3/16] 0.0, 128
        %627 = vxpose.xlu0.b32.cont [4/16] 0.0, 128
        %628 = vxpose.xlu0.b32.cont [5/16] 0.0, 128
        %629 = vxpose.xlu0.b32.cont [6/16] 0.0, 128
        %630 = vxpose.xlu0.b32.cont [7/16] 0.0, 128
        %631 = vxpose.xlu0.b32.cont [8/16] 0.0, 128
        %632 = vxpose.xlu0.b32.cont [9/16] 0.0, 128
        %633 = vxpose.xlu0.b32.cont [10/16] 0.0, 128
        %634 = vxpose.xlu0.b32.cont [11/16] 0.0, 128
        %635 = vxpose.xlu0.b32.cont [12/16] 0.0, 128
        %636 = vxpose.xlu0.b32.cont [13/16] 0.0, 128
        %637 = vxpose.xlu0.b32.cont [14/16] 0.0, 128
        %638 = vxpose.xlu0.b32.cont [15/16] 0.0, 128
        %639 = vxpose.xlu0.b32.end [16/16] 0.0, 128
        %v640 = vpop.trf.xlu0
        %v641 = vpop.trf.xlu0
        %v642 = vpop.trf.xlu0
        %v643 = vpop.trf.xlu0
        %v644 = vpop.trf.xlu0
        %v645 = vpop.trf.xlu0
        %v646 = vpop.trf.xlu0
        %v647 = vpop.trf.xlu0
        %v648 = vpop.trf.xlu0
        %v649 = vpop.trf.xlu0
        %v650 = vpop.trf.xlu0
        %v651 = vpop.trf.xlu0
        %v652 = vpop.trf.xlu0
        %v653 = vpop.trf.xlu0
        %v654 = vpop.trf.xlu0
        %v655 = vpop.trf.xlu0
        %656 = vxpose.xlu0.b32.start [1/16] %v463, 128
        %657 = vxpose.xlu0.b32.cont [2/16] %v466, 128
        %658 = vxpose.xlu0.b32.cont [3/16] 0.0, 128
        %659 = vxpose.xlu0.b32.cont [4/16] 0.0, 128
        %660 = vxpose.xlu0.b32.cont [5/16] 0.0, 128
        %661 = vxpose.xlu0.b32.cont [6/16] 0.0, 128
        %662 = vxpose.xlu0.b32.cont [7/16] 0.0, 128
        %663 = vxpose.xlu0.b32.cont [8/16] 0.0, 128
        %664 = vxpose.xlu0.b32.cont [9/16] 0.0, 128
        %665 = vxpose.xlu0.b32.cont [10/16] 0.0, 128
        %666 = vxpose.xlu0.b32.cont [11/16] 0.0, 128
        %667 = vxpose.xlu0.b32.cont [12/16] 0.0, 128
        %668 = vxpose.xlu0.b32.cont [13/16] 0.0, 128
        %669 = vxpose.xlu0.b32.cont [14/16] 0.0, 128
        %670 = vxpose.xlu0.b32.cont [15/16] 0.0, 128
        %671 = vxpose.xlu0.b32.end [16/16] 0.0, 128
        %v672 = vpop.trf.xlu0
        %v673 = vpop.trf.xlu0
        %v674 = vpop.trf.xlu0
        %v675 = vpop.trf.xlu0
        %v676 = vpop.trf.xlu0
        %v677 = vpop.trf.xlu0
        %v678 = vpop.trf.xlu0
        %v679 = vpop.trf.xlu0
        %v680 = vpop.trf.xlu0
        %v681 = vpop.trf.xlu0
        %v682 = vpop.trf.xlu0
        %v683 = vpop.trf.xlu0
        %v684 = vpop.trf.xlu0
        %v685 = vpop.trf.xlu0
        %v686 = vpop.trf.xlu0
        %v687 = vpop.trf.xlu0
        %688 = vxpose.xlu0.b32.start [1/16] %v469, 128
        %689 = vxpose.xlu0.b32.cont [2/16] %v472, 128
        %690 = vxpose.xlu0.b32.cont [3/16] 0.0, 128
        %691 = vxpose.xlu0.b32.cont [4/16] 0.0, 128
        %692 = vxpose.xlu0.b32.cont [5/16] 0.0, 128
        %693 = vxpose.xlu0.b32.cont [6/16] 0.0, 128
        %694 = vxpose.xlu0.b32.cont [7/16] 0.0, 128
        %695 = vxpose.xlu0.b32.cont [8/16] 0.0, 128
        %696 = vxpose.xlu0.b32.cont [9/16] 0.0, 128
        %697 = vxpose.xlu0.b32.cont [10/16] 0.0, 128
        %698 = vxpose.xlu0.b32.cont [11/16] 0.0, 128
        %699 = vxpose.xlu0.b32.cont [12/16] 0.0, 128
        %700 = vxpose.xlu0.b32.cont [13/16] 0.0, 128
        %701 = vxpose.xlu0.b32.cont [14/16] 0.0, 128
        %702 = vxpose.xlu0.b32.cont [15/16] 0.0, 128
        %703 = vxpose.xlu0.b32.end [16/16] 0.0, 128
        %v704 = vpop.trf.xlu0
        %v705 = vpop.trf.xlu0
        %v706 = vpop.trf.xlu0
        %v707 = vpop.trf.xlu0
        %v708 = vpop.trf.xlu0
        %v709 = vpop.trf.xlu0
        %v710 = vpop.trf.xlu0
        %v711 = vpop.trf.xlu0
        %v712 = vpop.trf.xlu0
        %v713 = vpop.trf.xlu0
        %v714 = vpop.trf.xlu0
        %v715 = vpop.trf.xlu0
        %v716 = vpop.trf.xlu0
        %v717 = vpop.trf.xlu0
        %v718 = vpop.trf.xlu0
        %v719 = vpop.trf.xlu0
        %720 = vxpose.xlu0.b32.start [1/16] %v475, 128
        %721 = vxpose.xlu0.b32.cont [2/16] %v478, 128
        %722 = vxpose.xlu0.b32.cont [3/16] 0.0, 128
        %723 = vxpose.xlu0.b32.cont [4/16] 0.0, 128
        %724 = vxpose.xlu0.b32.cont [5/16] 0.0, 128
        %725 = vxpose.xlu0.b32.cont [6/16] 0.0, 128
        %726 = vxpose.xlu0.b32.cont [7/16] 0.0, 128
        %727 = vxpose.xlu0.b32.cont [8/16] 0.0, 128
        %728 = vxpose.xlu0.b32.cont [9/16] 0.0, 128
        %729 = vxpose.xlu0.b32.cont [10/16] 0.0, 128
        %730 = vxpose.xlu0.b32.cont [11/16] 0.0, 128
        %731 = vxpose.xlu0.b32.cont [12/16] 0.0, 128
        %732 = vxpose.xlu0.b32.cont [13/16] 0.0, 128
        %733 = vxpose.xlu0.b32.cont [14/16] 0.0, 128
        %734 = vxpose.xlu0.b32.cont [15/16] 0.0, 128
        %735 = vxpose.xlu0.b32.end [16/16] 0.0, 128
        %v736 = vpop.trf.xlu0
        %v737 = vpop.trf.xlu0
        %v738 = vpop.trf.xlu0
        %v739 = vpop.trf.xlu0
        %v740 = vpop.trf.xlu0
        %v741 = vpop.trf.xlu0
        %v742 = vpop.trf.xlu0
        %v743 = vpop.trf.xlu0
        %v744 = vpop.trf.xlu0
        %v745 = vpop.trf.xlu0
        %v746 = vpop.trf.xlu0
        %v747 = vpop.trf.xlu0
        %v748 = vpop.trf.xlu0
        %v749 = vpop.trf.xlu0
        %v750 = vpop.trf.xlu0
        %v751 = vpop.trf.xlu0
        %752 = vxpose.xlu0.b32.start [1/16] %v481, 128
        %753 = vxpose.xlu0.b32.cont [2/16] %v484, 128
        %754 = vxpose.xlu0.b32.cont [3/16] 0.0, 128
        %755 = vxpose.xlu0.b32.cont [4/16] 0.0, 128
        %756 = vxpose.xlu0.b32.cont [5/16] 0.0, 128
        %757 = vxpose.xlu0.b32.cont [6/16] 0.0, 128
        %758 = vxpose.xlu0.b32.cont [7/16] 0.0, 128
        %759 = vxpose.xlu0.b32.cont [8/16] 0.0, 128
        %760 = vxpose.xlu0.b32.cont [9/16] 0.0, 128
        %761 = vxpose.xlu0.b32.cont [10/16] 0.0, 128
        %762 = vxpose.xlu0.b32.cont [11/16] 0.0, 128
        %763 = vxpose.xlu0.b32.cont [12/16] 0.0, 128
        %764 = vxpose.xlu0.b32.cont [13/16] 0.0, 128
        %765 = vxpose.xlu0.b32.cont [14/16] 0.0, 128
        %766 = vxpose.xlu0.b32.cont [15/16] 0.0, 128
        %767 = vxpose.xlu0.b32.end [16/16] 0.0, 128
        %v768 = vpop.trf.xlu0
        %v769 = vpop.trf.xlu0
        %v770 = vpop.trf.xlu0
        %v771 = vpop.trf.xlu0
        %v772 = vpop.trf.xlu0
        %v773 = vpop.trf.xlu0
        %v774 = vpop.trf.xlu0
        %v775 = vpop.trf.xlu0
        %v776 = vpop.trf.xlu0
        %v777 = vpop.trf.xlu0
        %v778 = vpop.trf.xlu0
        %v779 = vpop.trf.xlu0
        %v780 = vpop.trf.xlu0
        %v781 = vpop.trf.xlu0
        %v782 = vpop.trf.xlu0
        %v783 = vpop.trf.xlu0
        %784 = vxpose.xlu0.b32.start [1/16] %v487, 128
        %785 = vxpose.xlu0.b32.cont [2/16] %v490, 128
        %786 = vxpose.xlu0.b32.cont [3/16] 0.0, 128
        %787 = vxpose.xlu0.b32.cont [4/16] 0.0, 128
        %788 = vxpose.xlu0.b32.cont [5/16] 0.0, 128
        %789 = vxpose.xlu0.b32.cont [6/16] 0.0, 128
        %790 = vxpose.xlu0.b32.cont [7/16] 0.0, 128
        %791 = vxpose.xlu0.b32.cont [8/16] 0.0, 128
        %792 = vxpose.xlu0.b32.cont [9/16] 0.0, 128
        %793 = vxpose.xlu0.b32.cont [10/16] 0.0, 128
        %794 = vxpose.xlu0.b32.cont [11/16] 0.0, 128
        %795 = vxpose.xlu0.b32.cont [12/16] 0.0, 128
        %796 = vxpose.xlu0.b32.cont [13/16] 0.0, 128
        %797 = vxpose.xlu0.b32.cont [14/16] 0.0, 128
        %798 = vxpose.xlu0.b32.cont [15/16] 0.0, 128
        %799 = vxpose.xlu0.b32.end [16/16] 0.0, 128
        %v800 = vpop.trf.xlu0
        %v801 = vpop.trf.xlu0
        %v802 = vpop.trf.xlu0
        %v803 = vpop.trf.xlu0
        %v804 = vpop.trf.xlu0
        %v805 = vpop.trf.xlu0
        %v806 = vpop.trf.xlu0
        %v807 = vpop.trf.xlu0
        %v808 = vpop.trf.xlu0
        %v809 = vpop.trf.xlu0
        %v810 = vpop.trf.xlu0
        %v811 = vpop.trf.xlu0
        %v812 = vpop.trf.xlu0
        %v813 = vpop.trf.xlu0
        %v814 = vpop.trf.xlu0
        %v815 = vpop.trf.xlu0
        %816 = vxpose.xlu0.b32.start [1/16] %v493, 128
        %817 = vxpose.xlu0.b32.cont [2/16] %v496, 128
        %818 = vxpose.xlu0.b32.cont [3/16] 0.0, 128
        %819 = vxpose.xlu0.b32.cont [4/16] 0.0, 128
        %820 = vxpose.xlu0.b32.cont [5/16] 0.0, 128
        %821 = vxpose.xlu0.b32.cont [6/16] 0.0, 128
        %822 = vxpose.xlu0.b32.cont [7/16] 0.0, 128
        %823 = vxpose.xlu0.b32.cont [8/16] 0.0, 128
        %824 = vxpose.xlu0.b32.cont [9/16] 0.0, 128
        %825 = vxpose.xlu0.b32.cont [10/16] 0.0, 128
        %826 = vxpose.xlu0.b32.cont [11/16] 0.0, 128
        %827 = vxpose.xlu0.b32.cont [12/16] 0.0, 128
        %828 = vxpose.xlu0.b32.cont [13/16] 0.0, 128
        %829 = vxpose.xlu0.b32.cont [14/16] 0.0, 128
        %830 = vxpose.xlu0.b32.cont [15/16] 0.0, 128
        %831 = vxpose.xlu0.b32.end [16/16] 0.0, 128
        %v832 = vpop.trf.xlu0
        %v833 = vpop.trf.xlu0
        %v834 = vpop.trf.xlu0
        %v835 = vpop.trf.xlu0
        %v836 = vpop.trf.xlu0
        %v837 = vpop.trf.xlu0
        %v838 = vpop.trf.xlu0
        %v839 = vpop.trf.xlu0
        %v840 = vpop.trf.xlu0
        %v841 = vpop.trf.xlu0
        %v842 = vpop.trf.xlu0
        %v843 = vpop.trf.xlu0
        %v844 = vpop.trf.xlu0
        %v845 = vpop.trf.xlu0
        %v846 = vpop.trf.xlu0
        %v847 = vpop.trf.xlu0
        %848 = vxpose.xlu0.b32.start [1/16] %v499, 128
        %849 = vxpose.xlu0.b32.cont [2/16] %v502, 128
        %850 = vxpose.xlu0.b32.cont [3/16] 0.0, 128
        %851 = vxpose.xlu0.b32.cont [4/16] 0.0, 128
        %852 = vxpose.xlu0.b32.cont [5/16] 0.0, 128
        %853 = vxpose.xlu0.b32.cont [6/16] 0.0, 128
        %854 = vxpose.xlu0.b32.cont [7/16] 0.0, 128
        %855 = vxpose.xlu0.b32.cont [8/16] 0.0, 128
        %856 = vxpose.xlu0.b32.cont [9/16] 0.0, 128
        %857 = vxpose.xlu0.b32.cont [10/16] 0.0, 128
        %858 = vxpose.xlu0.b32.cont [11/16] 0.0, 128
        %859 = vxpose.xlu0.b32.cont [12/16] 0.0, 128
        %860 = vxpose.xlu0.b32.cont [13/16] 0.0, 128
        %861 = vxpose.xlu0.b32.cont [14/16] 0.0, 128
        %862 = vxpose.xlu0.b32.cont [15/16] 0.0, 128
        %863 = vxpose.xlu0.b32.end [16/16] 0.0, 128
        %v864 = vpop.trf.xlu0
        %v865 = vpop.trf.xlu0
        %v866 = vpop.trf.xlu0
        %v867 = vpop.trf.xlu0
        %v868 = vpop.trf.xlu0
        %v869 = vpop.trf.xlu0
        %v870 = vpop.trf.xlu0
        %v871 = vpop.trf.xlu0
        %v872 = vpop.trf.xlu0
        %v873 = vpop.trf.xlu0
        %v874 = vpop.trf.xlu0
        %v875 = vpop.trf.xlu0
        %v876 = vpop.trf.xlu0
        %v877 = vpop.trf.xlu0
        %v878 = vpop.trf.xlu0
        %v879 = vpop.trf.xlu0
        %880 = vxpose.xlu0.b32.start [1/16] %v505, 128
        %881 = vxpose.xlu0.b32.cont [2/16] %v508, 128
        %882 = vxpose.xlu0.b32.cont [3/16] 0.0, 128
        %883 = vxpose.xlu0.b32.cont [4/16] 0.0, 128
        %884 = vxpose.xlu0.b32.cont [5/16] 0.0, 128
        %885 = vxpose.xlu0.b32.cont [6/16] 0.0, 128
        %886 = vxpose.xlu0.b32.cont [7/16] 0.0, 128
        %887 = vxpose.xlu0.b32.cont [8/16] 0.0, 128
        %888 = vxpose.xlu0.b32.cont [9/16] 0.0, 128
        %889 = vxpose.xlu0.b32.cont [10/16] 0.0, 128
        %890 = vxpose.xlu0.b32.cont [11/16] 0.0, 128
        %891 = vxpose.xlu0.b32.cont [12/16] 0.0, 128
        %892 = vxpose.xlu0.b32.cont [13/16] 0.0, 128
        %893 = vxpose.xlu0.b32.cont [14/16] 0.0, 128
        %894 = vxpose.xlu0.b32.cont [15/16] 0.0, 128
        %895 = vxpose.xlu0.b32.end [16/16] 0.0, 128
        %v896 = vpop.trf.xlu0
        %v897 = vpop.trf.xlu0
        %v898 = vpop.trf.xlu0
        %v899 = vpop.trf.xlu0
        %v900 = vpop.trf.xlu0
        %v901 = vpop.trf.xlu0
        %v902 = vpop.trf.xlu0
        %v903 = vpop.trf.xlu0
        %v904 = vpop.trf.xlu0
        %v905 = vpop.trf.xlu0
        %v906 = vpop.trf.xlu0
        %v907 = vpop.trf.xlu0
        %v908 = vpop.trf.xlu0
        %v909 = vpop.trf.xlu0
        %v910 = vpop.trf.xlu0
        %v911 = vpop.trf.xlu0
        %912 = vxpose.xlu0.b32.start [1/16] %v511, 128
        %913 = vxpose.xlu0.b32.cont [2/16] %v514, 128
        %914 = vxpose.xlu0.b32.cont [3/16] 0.0, 128
        %915 = vxpose.xlu0.b32.cont [4/16] 0.0, 128
        %916 = vxpose.xlu0.b32.cont [5/16] 0.0, 128
        %917 = vxpose.xlu0.b32.cont [6/16] 0.0, 128
        %918 = vxpose.xlu0.b32.cont [7/16] 0.0, 128
        %919 = vxpose.xlu0.b32.cont [8/16] 0.0, 128
        %920 = vxpose.xlu0.b32.cont [9/16] 0.0, 128
        %921 = vxpose.xlu0.b32.cont [10/16] 0.0, 128
        %922 = vxpose.xlu0.b32.cont [11/16] 0.0, 128
        %923 = vxpose.xlu0.b32.cont [12/16] 0.0, 128
        %924 = vxpose.xlu0.b32.cont [13/16] 0.0, 128
        %925 = vxpose.xlu0.b32.cont [14/16] 0.0, 128
        %926 = vxpose.xlu0.b32.cont [15/16] 0.0, 128
        %927 = vxpose.xlu0.b32.end [16/16] 0.0, 128
        %v928 = vpop.trf.xlu0
        %v929 = vpop.trf.xlu0
        %v930 = vpop.trf.xlu0
        %v931 = vpop.trf.xlu0
        %v932 = vpop.trf.xlu0
        %v933 = vpop.trf.xlu0
        %v934 = vpop.trf.xlu0
        %v935 = vpop.trf.xlu0
        %v936 = vpop.trf.xlu0
        %v937 = vpop.trf.xlu0
        %v938 = vpop.trf.xlu0
        %v939 = vpop.trf.xlu0
        %v940 = vpop.trf.xlu0
        %v941 = vpop.trf.xlu0
        %v942 = vpop.trf.xlu0
        %v943 = vpop.trf.xlu0
        %944 = vxpose.xlu0.b32.start [1/16] %v517, 128
        %945 = vxpose.xlu0.b32.cont [2/16] %v520, 128
        %946 = vxpose.xlu0.b32.cont [3/16] 0.0, 128
        %947 = vxpose.xlu0.b32.cont [4/16] 0.0, 128
        %948 = vxpose.xlu0.b32.cont [5/16] 0.0, 128
        %949 = vxpose.xlu0.b32.cont [6/16] 0.0, 128
        %950 = vxpose.xlu0.b32.cont [7/16] 0.0, 128
        %951 = vxpose.xlu0.b32.cont [8/16] 0.0, 128
        %952 = vxpose.xlu0.b32.cont [9/16] 0.0, 128
        %953 = vxpose.xlu0.b32.cont [10/16] 0.0, 128
        %954 = vxpose.xlu0.b32.cont [11/16] 0.0, 128
        %955 = vxpose.xlu0.b32.cont [12/16] 0.0, 128
        %956 = vxpose.xlu0.b32.cont [13/16] 0.0, 128
        %957 = vxpose.xlu0.b32.cont [14/16] 0.0, 128
        %958 = vxpose.xlu0.b32.cont [15/16] 0.0, 128
        %959 = vxpose.xlu0.b32.end [16/16] 0.0, 128
        %v960 = vpop.trf.xlu0
        %v961 = vpop.trf.xlu0
        %v962 = vpop.trf.xlu0
        %v963 = vpop.trf.xlu0
        %v964 = vpop.trf.xlu0
        %v965 = vpop.trf.xlu0
        %v966 = vpop.trf.xlu0
        %v967 = vpop.trf.xlu0
        %v968 = vpop.trf.xlu0
        %v969 = vpop.trf.xlu0
        %v970 = vpop.trf.xlu0
        %v971 = vpop.trf.xlu0
        %v972 = vpop.trf.xlu0
        %v973 = vpop.trf.xlu0
        %v974 = vpop.trf.xlu0
        %v975 = vpop.trf.xlu0
        %976 = vxpose.xlu0.b32.start [1/16] %v523, 128
        %977 = vxpose.xlu0.b32.cont [2/16] %v526, 128
        %978 = vxpose.xlu0.b32.cont [3/16] 0.0, 128
        %979 = vxpose.xlu0.b32.cont [4/16] 0.0, 128
        %980 = vxpose.xlu0.b32.cont [5/16] 0.0, 128
        %981 = vxpose.xlu0.b32.cont [6/16] 0.0, 128
        %982 = vxpose.xlu0.b32.cont [7/16] 0.0, 128
        %983 = vxpose.xlu0.b32.cont [8/16] 0.0, 128
        %984 = vxpose.xlu0.b32.cont [9/16] 0.0, 128
        %985 = vxpose.xlu0.b32.cont [10/16] 0.0, 128
        %986 = vxpose.xlu0.b32.cont [11/16] 0.0, 128
        %987 = vxpose.xlu0.b32.cont [12/16] 0.0, 128
        %988 = vxpose.xlu0.b32.cont [13/16] 0.0, 128
        %989 = vxpose.xlu0.b32.cont [14/16] 0.0, 128
        %990 = vxpose.xlu0.b32.cont [15/16] 0.0, 128
        %991 = vxpose.xlu0.b32.end [16/16] 0.0, 128
        %v992 = vpop.trf.xlu0
        %v993 = vpop.trf.xlu0
        %v994 = vpop.trf.xlu0
        %v995 = vpop.trf.xlu0
        %v996 = vpop.trf.xlu0
        %v997 = vpop.trf.xlu0
        %v998 = vpop.trf.xlu0
        %v999 = vpop.trf.xlu0
        %v1000 = vpop.trf.xlu0
        %v1001 = vpop.trf.xlu0
        %v1002 = vpop.trf.xlu0
        %v1003 = vpop.trf.xlu0
        %v1004 = vpop.trf.xlu0
        %v1005 = vpop.trf.xlu0
        %v1006 = vpop.trf.xlu0
        %v1007 = vpop.trf.xlu0
        %v1009 = vsel %vm330, %v544, 0
        %v1012 = vsel %vm330, %v576, 0
        %v1015 = vsel %vm330, %v608, 0
        %v1018 = vsel %vm330, %v640, 0
        %v1021 = vsel %vm330, %v672, 0
        %v1024 = vsel %vm330, %v704, 0
        %v1027 = vsel %vm330, %v736, 0
        %v1030 = vsel %vm330, %v768, 0
        %v1033 = vsel %vm330, %v800, 0
        %v1036 = vsel %vm330, %v832, 0
        %v1039 = vsel %vm330, %v864, 0
        %v1042 = vsel %vm330, %v896, 0
        %v1045 = vsel %vm330, %v928, 0
        %v1048 = vsel %vm330, %v960, 0
        %v1051 = vsel %vm330, %v992, 0
        %1053 = vmatpush.msra.mxu0 0.0
        %1054 = vmatpush.msra.mxu0 0.0
        %1055 = vmatpush.msra.mxu0 0.0
        %1056 = vmatpush.msra.mxu0 0.0
        %1057 = vmatpush.msra.mxu0 0.0
        %1058 = vmatpush.msra.mxu0 0.0
        %1059 = vmatpush.msra.mxu0 0.0
        %1060 = vmatpush.msra.mxu0 0.0
        %1061 = vmatpush.msra.mxu0 0.0
        %1062 = vmatpush.msra.mxu0 0.0
        %1063 = vmatpush.msra.mxu0 0.0
        %1064 = vmatpush.msra.mxu0 0.0
        %1065 = vmatpush.msra.mxu0 0.0
        %1066 = vmatpush.msra.mxu0 0.0
        %1067 = vmatpush.msra.mxu0 %v311
        %1068 = vmatpush.msra.mxu0 %v310
        %1069 = vmatmul.f32.gmra.mxu0 %v1009
        %v1070 = vpop.f32.mrf.mxu0
        %v1071 = vadd.f32 0.0, %v1070
        %1072 = vmatmul.f32.gmra.mxu0 %v1012
        %v1073 = vpop.f32.mrf.mxu0
        %v1074 = vadd.f32 0.0, %v1073
        %1075 = vmatmul.f32.gmra.mxu0 %v1015
        %v1076 = vpop.f32.mrf.mxu0
        %v1077 = vadd.f32 0.0, %v1076
        %1078 = vmatmul.f32.gmra.mxu0 %v1018
        %v1079 = vpop.f32.mrf.mxu0
        %v1080 = vadd.f32 0.0, %v1079
        %1081 = vmatmul.f32.gmra.mxu0 %v1021
        %v1082 = vpop.f32.mrf.mxu0
        %v1083 = vadd.f32 0.0, %v1082
        %1084 = vmatmul.f32.gmra.mxu0 %v1024
        %v1085 = vpop.f32.mrf.mxu0
        %v1086 = vadd.f32 0.0, %v1085
        %1087 = vmatmul.f32.gmra.mxu0 %v1027
        %v1088 = vpop.f32.mrf.mxu0
        %v1089 = vadd.f32 0.0, %v1088
        %1090 = vmatmul.f32.gmra.mxu0 %v1030
        %v1091 = vpop.f32.mrf.mxu0
        %v1092 = vadd.f32 0.0, %v1091
        %1093 = vmatmul.f32.gmra.mxu0 %v1033
        %v1094 = vpop.f32.mrf.mxu0
        %v1095 = vadd.f32 0.0, %v1094
        %1096 = vmatmul.f32.gmra.mxu0 %v1036
        %v1097 = vpop.f32.mrf.mxu0
        %v1098 = vadd.f32 0.0, %v1097
        %1099 = vmatmul.f32.gmra.mxu0 %v1039
        %v1100 = vpop.f32.mrf.mxu0
        %v1101 = vadd.f32 0.0, %v1100
        %1102 = vmatmul.f32.gmra.mxu0 %v1042
        %v1103 = vpop.f32.mrf.mxu0
        %v1104 = vadd.f32 0.0, %v1103
        %1105 = vmatmul.f32.gmra.mxu0 %v1045
        %v1106 = vpop.f32.mrf.mxu0
        %v1107 = vadd.f32 0.0, %v1106
        %1108 = vmatmul.f32.gmra.mxu0 %v1048
        %v1109 = vpop.f32.mrf.mxu0
        %v1110 = vadd.f32 0.0, %v1109
        %1111 = vmatmul.f32.gmra.mxu0 %v1051
        %v1112 = vpop.f32.mrf.mxu0
        %v1113 = vadd.f32 0.0, %v1112
        %1114 = vdwg.mxu0
        %v1115 = vmul.f32 %v1071, %v1071
        %v1116 = vmul.f32 %v1074, %v1074
        %v1117 = vmul.f32 %v1077, %v1077
        %v1118 = vmul.f32 %v1080, %v1080
        %v1119 = vmul.f32 %v1083, %v1083
        %v1120 = vmul.f32 %v1086, %v1086
        %v1121 = vmul.f32 %v1071, %v1080
        %v1122 = vmul.f32 %v1074, %v1083
        %v1123 = vmul.f32 %v1077, %v1086
        %v1124 = vsub.f32 %v1089, %v1115
        %v1125 = vsub.f32 %v1092, %v1116
        %v1126 = vsub.f32 %v1095, %v1117
        %v1127 = vsub.f32 %v1098, %v1118
        %v1128 = vsub.f32 %v1101, %v1119
        %v1129 = vsub.f32 %v1104, %v1120
        %v1130 = vsub.f32 %v1107, %v1121
        %v1131 = vsub.f32 %v1110, %v1122
        %v1132 = vsub.f32 %v1113, %v1123
        %v1133 = vmul.f32 %v1130, 2.0
        %v1134 = vmul.f32 %v1131, 2.0
        %v1135 = vmul.f32 %v1132, 2.0
        %v1136 = vadd.f32 %v1133, 0.0009
        %v1137 = vadd.f32 %v1134, 0.0009
        %v1138 = vadd.f32 %v1135, 0.0009
        %v1139 = vadd.f32 %v1124, %v1127
        %v1140 = vadd.f32 %v1125, %v1128
        %v1141 = vadd.f32 %v1126, %v1129
        %v1142 = vadd.f32 %v1139, 0.0009
        %v1143 = vadd.f32 %v1140, 0.0009
        %v1144 = vadd.f32 %v1141, 0.0009
        %v1145 = vmul.f32 %v1121, 2.0
        %v1146 = vmul.f32 %v1122, 2.0
        %v1147 = vmul.f32 %v1123, 2.0
        %v1148 = vadd.f32 %v1145, 0.0001
        %v1149 = vadd.f32 %v1146, 0.0001
        %v1150 = vadd.f32 %v1147, 0.0001
        %v1151 = vadd.f32 %v1115, %v1118
        %v1152 = vadd.f32 %v1116, %v1119
        %v1153 = vadd.f32 %v1117, %v1120
        %v1154 = vadd.f32 %v1151, 0.0001
        %v1155 = vadd.f32 %v1152, 0.0001
        %v1156 = vadd.f32 %v1153, 0.0001
        %v1157 = vmul.f32 %v1142, %v1154
        %v1158 = vmul.f32 %v1143, %v1155
        %v1159 = vmul.f32 %v1144, %v1156
        %v1160 = vrcp.pop %v1157
        %v1161 = vmul.f32 %v1157, %v1160
        %v1162 = vsub.f32 1.0, %v1161
        %v1163 = vmul.f32 %v1160, %v1162
        %v1164 = vadd.f32 %v1160, %v1163
        %vm1165 = vweird.f32 %v1157
        %vm1166 = vweird.f32 %v1160
        %vm1167 = vmor %vm1165, %vm1166
        %v1168 = vsel %vm1167, %v1160, %v1164
        %v1169 = vand.u32 2147483647, %v1157
        %vm1170 = vcmp.eq.f32.partialorder %v1169, 8.507059e+37
        %v1171 = vand.u32 %v1157, 2147483648
        %v1172 = vor.u32 1.1754944e-38, %v1171
        %v1173 = vsel %vm1170, %v1172, %v1168
        %v1174 = vrcp.pop %v1158
        %v1175 = vmul.f32 %v1158, %v1174
        %v1176 = vsub.f32 1.0, %v1175
        %v1177 = vmul.f32 %v1174, %v1176
        %v1178 = vadd.f32 %v1174, %v1177
        %vm1179 = vweird.f32 %v1158
        %vm1180 = vweird.f32 %v1174
        %vm1181 = vmor %vm1179, %vm1180
        %v1182 = vsel %vm1181, %v1174, %v1178
        %v1183 = vand.u32 2147483647, %v1158
        %vm1184 = vcmp.eq.f32.partialorder %v1183, 8.507059e+37
        %v1185 = vand.u32 %v1158, 2147483648
        %v1186 = vor.u32 1.1754944e-38, %v1185
        %v1187 = vsel %vm1184, %v1186, %v1182
        %v1188 = vrcp.pop %v1159
        %v1189 = vmul.f32 %v1159, %v1188
        %v1190 = vsub.f32 1.0, %v1189
        %v1191 = vmul.f32 %v1188, %v1190
        %v1192 = vadd.f32 %v1188, %v1191
        %vm1193 = vweird.f32 %v1159
        %vm1194 = vweird.f32 %v1188
        %vm1195 = vmor %vm1193, %vm1194
        %v1196 = vsel %vm1195, %v1188, %v1192
        %v1197 = vand.u32 2147483647, %v1159
        %vm1198 = vcmp.eq.f32.partialorder %v1197, 8.507059e+37
        %v1199 = vand.u32 %v1159, 2147483648
        %v1200 = vor.u32 1.1754944e-38, %v1199
        %v1201 = vsel %vm1198, %v1200, %v1196
        %v1202 = vmul.f32 %v1136, %v1154
        %v1203 = vmul.f32 %v1137, %v1155
        %v1204 = vmul.f32 %v1138, %v1156
        %v1205 = vmul.f32 %v1202, %v1173
        %v1206 = vmul.f32 %v1203, %v1187
        %v1207 = vmul.f32 %v1204, %v1201
        %v1208 = vmul.f32 %v1148, %v1136
        %v1209 = vmul.f32 %v1149, %v1137
        %v1210 = vmul.f32 %v1150, %v1138
        %v1211 = vmul.f32 %v1208, %v1173
        %v1212 = vmul.f32 %v1209, %v1187
        %v1213 = vmul.f32 %v1210, %v1201
        %v1214 = vlaneseq
        %v1215 = vshrl.u32 %v1214, 7
        %vm1216 = vcmp.lt.s32.totalorder %v1215, 6
        %v1217 = vsel %vm1216, 1, 0
        %v1218 = vcvt.s32.f32 %v1217
        %v1219 = vmul.f32 %v1211, %v1218
        %v1220 = vmul.f32 %v1212, %v1218
        %v1221 = vmul.f32 %v1213, %v1218
        %v1222 = vmul.f32 %v1205, %v1218
        %v1223 = vmul.f32 %v1206, %v1218
        %v1224 = vmul.f32 %v1207, %v1218
        %vm1225 = vcmask 48128
        %v1226 = vsel %vm1225, %v1219, 0.0
        %1227 = vadd.xlane.f32.xlu0 %v1226
        %v1228 = vpop.xlane.xlu0 %1227
        %v1229 = vsel %vm1225, %v1220, 0.0
        %1230 = vadd.xlane.f32.xlu0 %v1229
        %v1231 = vpop.xlane.xlu0 %1230
        %v1232 = vsel %vm1225, %v1221, 0.0
        %1233 = vadd.xlane.f32.xlu0 %v1232
        %v1234 = vpop.xlane.xlu0 %1233
        %v1238 = vlaneseq
        %v1239 = vand.u32 %v1238, 127
        %v1240 = vperm.slane %v1228, %v1239
        %v1241 = vperm.slane %v1231, %v1239
        %v1242 = vperm.slane %v1234, %v1239
        %vm1243 = vcmask 1041409
        %v1244 = vsel %vm1243, %v1241, %v1240
        %vm1245 = vcmask 1042434
        %v1246 = vsel %vm1245, %v1242, %v1244
        %vm1248 = vcmask 59392
        %v1249 = vsel %vm1248, %v1246, 0.0
        %1250 = vadd.xlane.f32.xlu0 %v1249
        %v1251 = vpop.xlane.xlu0 %1250
        %v1252 = vmul.f32 %v1251, 0.027777778
        %v1253 = vsel %vm1225, %v1222, 0.0
        %1254 = vadd.xlane.f32.xlu0 %v1253
        %v1255 = vpop.xlane.xlu0 %1254
        %v1256 = vsel %vm1225, %v1223, 0.0
        %1257 = vadd.xlane.f32.xlu0 %v1256
        %v1258 = vpop.xlane.xlu0 %1257
        %v1259 = vsel %vm1225, %v1224, 0.0
        %1260 = vadd.xlane.f32.xlu0 %v1259
        %v1261 = vpop.xlane.xlu0 %1260
        %v1265 = vperm.slane %v1255, %v1239
        %v1266 = vperm.slane %v1258, %v1239
        %v1267 = vperm.slane %v1261, %v1239
        %v1268 = vsel %vm1243, %v1266, %v1265
        %v1269 = vsel %vm1245, %v1267, %v1268
        %v1271 = vsel %vm1248, %v1269, 0.0
        %1272 = vadd.xlane.f32.xlu0 %v1271
        %v1273 = vpop.xlane.xlu0 %1272
        %v1274 = vmul.f32 %v1273, 0.027777778
        %v1276 = vperm.slane %v1252, %v1239
        %vm1278 = vcmask 16384
        %1279 = vst.msk [vmem:[%s289] sm:$0x1] %vm1278, %v1276
        %v1281 = vperm.slane %v1274, %v1239
        %1283 = vst.msk [vmem:[%s295] sm:$0x1] %vm1278, %v1281
        %s1284 = sand.u32 %s131, 1
        %s1285 = scalar_lea.sflag [#allocation4], %s1284
        %s1286 = sand.u32 %s131, 1
        %s1287 = scalar_lea.vmem [#allocation7], %s1286
        %s1288 = sand.u32 %s157, 1
        %s1289 = scalar_lea.sflag [#allocation9], %s1288
        %s1290 = sand.u32 %s157, 1
        %s1291 = scalar_lea.vmem [#allocation8], %s1290
        // Predicated region
        $region45: #{tpu_custom_call.1} parent=35 // pred_check
          %p1292 = pneg %p141
        $region46: #{tpu_custom_call.1} parent=35 // pred_check_branch
          %1294 = sbr.rel (%p1292) target = $region48
        $region47: #{tpu_custom_call.1} parent=35 // pred_region
          %1296 = vsyncadd %s1285, 0
          %s1297 = scalar_lea.hbm %s4, %s29
          %s1299 = sshll.u32 %s1287, 4
          %s1300 = int_to_ptr.vmem [resolvable:$true] %s1299
          %s1301 = sshll.u32 %s1297, 4
          %s1302 = int_to_ptr.hbm [resolvable:$true] %s1301
          %1304 = dma.vmem_to_hbm [thread:$0]  %s1300, 16, %s1302, %s1285
        $region48: #{tpu_custom_call.1} parent=35 // pred_fallthru
          _
        // Predicated region
        $region49: #{tpu_custom_call.1} parent=35 // pred_check
          %p1305 = pneg %p167
        $region50: #{tpu_custom_call.1} parent=35 // pred_check_branch
          %1307 = sbr.rel (%p1305) target = $region52
        $region51: #{tpu_custom_call.1} parent=35 // pred_region
          %1309 = vsyncadd %s1289, 0
          %s1310 = scalar_lea.hbm %s5, %s29
          %s1312 = sshll.u32 %s1291, 4
          %s1313 = int_to_ptr.vmem [resolvable:$true] %s1312
          %s1314 = sshll.u32 %s1310, 4
          %s1315 = int_to_ptr.hbm [resolvable:$true] %s1314
          %1317 = dma.vmem_to_hbm [thread:$0]  %s1313, 16, %s1315, %s1289
        $region52: #{tpu_custom_call.1} parent=35 // pred_fallthru
          _
      $region36: #{tpu_custom_call.1} parent=5 // pred_fallthru
        _
      %p1318 = scmp.le.s32.totalorder 2, %s24
      // Predicated region
      $region53: #{tpu_custom_call.1} parent=5 // pred_check
        %p1319 = pneg %p1318
      $region54: #{tpu_custom_call.1} parent=5 // pred_check_branch
        %1321 = sbr.rel (%p1319) target = $region56
      $region55: #{tpu_custom_call.1} parent=5 // pred_region
        %s1322 = ssub.s32 %s24, 2
        // Predicated region
        $region57: #{tpu_custom_call.1} parent=55 // pred_check
          %p1323 = pneg %p147
        $region58: #{tpu_custom_call.1} parent=55 // pred_check_branch
          %1325 = sbr.rel (%p1323) target = $region60
        $region59: #{tpu_custom_call.1} parent=55 // pred_region
          %s1326 = sand.u32 %s132, 1
          %s1327 = scalar_lea.sflag [#allocation4], %s1326
          %s1328 = sand.u32 %s132, 1
          %s1329 = scalar_lea.vmem [#allocation7], %s1328
          %1331 = dma.done %s1327, 16
        $region60: #{tpu_custom_call.1} parent=55 // pred_fallthru
          _
        // Predicated region
        $region61: #{tpu_custom_call.1} parent=55 // pred_check
          %p1332 = pneg %p173
        $region62: #{tpu_custom_call.1} parent=55 // pred_check_branch
          %1334 = sbr.rel (%p1332) target = $region64
        $region63: #{tpu_custom_call.1} parent=55 // pred_region
          %s1335 = sand.u32 %s158, 1
          %s1336 = scalar_lea.sflag [#allocation9], %s1335
          %s1337 = sand.u32 %s158, 1
          %s1338 = scalar_lea.vmem [#allocation8], %s1337
          %1340 = dma.done %s1336, 16
        $region64: #{tpu_custom_call.1} parent=55 // pred_fallthru
          _
      $region56: #{tpu_custom_call.1} parent=5 // pred_fallthru
        _
    $region6: #{tpu_custom_call.1} parent=1 // loop_footer
      %s28 = sadd.s32 1, %s24
    $region7: #{tpu_custom_call.1} parent=1 // loop_footer_branch
      %23 = sbr.rel target = $region3
    $region8: #{tpu_custom_call.1} parent=1 // loop_exit
      _
    %1341 = vsyncpa [#allocation3], 1
    %s1342 = scalar_lea.sflag [#allocation3], 1
    %1343 = vsyncpa %s1342, 1
    %1344 = vsyncpa [#allocation6], 1
    %s1345 = scalar_lea.sflag [#allocation6], 1
    %1346 = vsyncpa %s1345, 1
    %1347 = vsyncpa [#allocation4], 1
    %s1348 = scalar_lea.sflag [#allocation4], 1
    %1349 = vsyncpa %s1348, 1
    %1350 = vsyncpa [#allocation9], 1
    %s1351 = scalar_lea.sflag [#allocation9], 1
    %1352 = vsyncpa %s1351, 1

</llo_original>
